<compile_context>
chip_gen: v7x
topology: tpu7x:2x2x1
jax: 0.10.0
libtpu: 0.0.40
codegen_flags: <defaults>
</compile_context>

<pallas_src>
import math

import jax
import jax.numpy as jnp
from jax import lax
from jax.experimental import pallas as pl
from jax.experimental.pallas import tpu as pltpu


def _make_cam_kernel(n_layers, hidden_feats, has_hidden_w):
    """Kernel body.

    Ref order: xT, A_all, vecs, [W_hid], WlastB, out
      xT      (1, T)        coordinates, T samples on lanes
      A_all   (2L, 64)      row 2i = scale profile, row 2i+1 = shift profile
      vecs    (H, L+1)      col 0 = first-layer weight (in=1), cols 1..L = biases
      W_hid   (L-1, H, H)   hidden->hidden weights, stored (out, in)  [if L > 1]
      WlastB  (out, H+1)    last linear, last column = bias
      out     (out, T)
    """
    H = hidden_feats

    def kernel(*refs):
        x_ref = refs[0]
        a_ref = refs[1]
        vecs_ref = refs[2]
        if has_hidden_w:
            whid_ref = refs[3]
            wlast_ref = refs[4]
        else:
            whid_ref = None
            wlast_ref = refs[3]
        out_ref = refs[-1]

        x0 = x_ref[...]                                    # (1, T)
        T = x0.shape[1]

        # --- grid_sample coordinate math (align_corners=True, bilinear, zero
        # padding).  Width coord is always 0 -> only the 64-bin height axis is
        # interpolated: iy = x * 63.
        iy = x0 * 63.0
        iy0f = jnp.floor(iy)
        frac = iy - iy0f                                   # (1, T)
        iy0 = iy0f.astype(jnp.int32)                       # (1, T)
        idx = lax.broadcasted_iota(jnp.int32, (64, T), 0)  # bins on sublanes
        # One-hot bilinear weights; out-of-range indices match no bin -> 0
        # (== zero padding_mode).
        w = (jnp.where(idx == iy0, 1.0 - frac, 0.0)
             + jnp.where(idx == iy0 + 1, frac, 0.0))        # (64, T)

        # All layers' scale/shift in ONE MXU matmul: (2L, 64) @ (64, T).
        ss = jnp.dot(a_ref[...], w, preferred_element_type=jnp.float32)  # (2L, T)

        vecs = vecs_ref[...]                               # (H, L+1)

        # Layer 0: Linear(1 -> H) is an outer product / broadcast multiply.
        h = vecs[:, 0:1] * x0 + vecs[:, 1:2]               # (H, T)
        h = ss[0:1, :] * h + ss[1:2, :]

        for i in range(1, n_layers):
            Wi = whid_ref[i - 1]                           # (H, H), (out, in)
            bi = vecs[:, i + 1:i + 2]                      # (H, 1)
            h = jnp.dot(Wi, h, preferred_element_type=jnp.float32) + bi
            h = ss[2 * i:2 * i + 1, :] * h + ss[2 * i + 1:2 * i + 2, :]

        wl = wlast_ref[...]                                # (out, H+1)
        out_ref[...] = (jnp.dot(wl[:, :H], h, preferred_element_type=jnp.float32)
                        + wl[:, H:H + 1])

    return kernel


def cam_forward_pallas(x, params, *, tile_n=1024):
    """x: (N, 1) float32.  params: dict with 'ws' [(W,b)...] (W (in,out), b (1,out)),
    'w_last' (H,out), 'b_last' (1,out), 'affines' [(2,64)...].  Returns (N, out)."""
    N = x.shape[0]
    n_layers = len(params["ws"])
    H = params["w_last"].shape[0]
    out_feats = params["w_last"].shape[1]

    tile_n = min(tile_n, N)
    assert N % tile_n == 0, "N must be divisible by tile_n"
    assert tile_n == N or tile_n % 128 == 0

    # ---- pack parameters into a few lane/sublane-friendly slabs -------------
    # (weights transposed to (out, in) so the kernel computes W @ h).
    ws = params["ws"]
    W0, _ = ws[0]
    vec_cols = [W0.T] + [b.T for (_, b) in ws]             # each (H, 1)
    vecs = jnp.concatenate(vec_cols, axis=1)               # (H, L+1)

    has_hidden_w = n_layers > 1
    if has_hidden_w:
        w_hid = jnp.stack([W.T for (W, _) in ws[1:]], axis=0)   # (L-1, H, H)

    a_all = jnp.concatenate(params["affines"], axis=0)     # (2L, 64)
    wlast_b = jnp.concatenate(
        [params["w_last"].T, params["b_last"].T], axis=1)  # (out, H+1)

    xT = x.T                                               # (1, N), N on lanes

    inputs = [xT, a_all, vecs]
    in_specs = [
        pl.BlockSpec((1, tile_n), lambda i: (0, i)),
        pl.BlockSpec(a_all.shape, lambda i: (0, 0)),
        pl.BlockSpec(vecs.shape, lambda i: (0, 0)),
    ]
    if has_hidden_w:
        inputs.append(w_hid)
        in_specs.append(pl.BlockSpec(w_hid.shape, lambda i: (0, 0, 0)))
    inputs.append(wlast_b)
    in_specs.append(pl.BlockSpec(wlast_b.shape, lambda i: (0, 0)))

    outT = pl.pallas_call(
        _make_cam_kernel(n_layers, H, has_hidden_w),
        out_shape=jax.ShapeDtypeStruct((out_feats, N), jnp.float32),
        grid=(N // tile_n,),
        in_specs=in_specs,
        out_specs=pl.BlockSpec((out_feats, tile_n), lambda i: (0, i)),
        compiler_params=pltpu.CompilerParams(
            dimension_semantics=("parallel",)),
    )(*inputs)
    return outT.T                                          # (N, out_feats)


def cam_reference(x, params):
    """Pure-JAX reference replicating the PyTorch forward (incl. grid_sample)."""
    iy = x * 63.0
    iy0f = jnp.floor(iy)
    frac = iy - iy0f
    iy0 = iy0f.astype(jnp.int32)

    def sample(A):  # A: (2, 64)
        def row(r):
            i0, i1 = iy0, iy0 + 1
            in0 = (i0 >= 0) & (i0 < 64)
            in1 = (i1 >= 0) & (i1 < 64)
            v0 = jnp.where(in0, r[jnp.clip(i0, 0, 63)], 0.0)
            v1 = jnp.where(in1, r[jnp.clip(i1, 0, 63)], 0.0)
            return (1.0 - frac) * v0 + frac * v1
        return row(A[0]), row(A[1])

    h = x
    for (W, b), A in zip(params["ws"], params["affines"]):
        h = h @ W + b
        s, t = sample(A)
        h = s * h + t
    return h @ params["w_last"] + params["b_last"]


def init_params(key, in_feats, hidden_feats, n_hidden_layers, out_feats):
    # Module __init__ shapes: net = [Linear(1,H)] + n_hidden_layers*[Linear(H,H)],
    # net_last = Linear(H, out), affine[i] of shape (1,2,64,1) -> stored (2,64).
    # NOTE: __init__ fills affine with [ones; zeros]; we randomize (deterministic)
    # so the grid_sample path is actually exercised.
    n_layers = n_hidden_layers + 1
    dims = [in_feats] + [hidden_feats] * n_layers
    ws = []
    for i in range(n_layers):
        key, kw, kb = jax.random.split(key, 3)
        bound = 1.0 / math.sqrt(dims[i])
        W = jax.random.uniform(kw, (dims[i], dims[i + 1]), jnp.float32, -bound, bound)
        b = jax.random.uniform(kb, (1, dims[i + 1]), jnp.float32, -bound, bound)
        ws.append((W, b))
    key, kw, kb = jax.random.split(key, 3)
    bound = 1.0 / math.sqrt(hidden_feats)
    w_last = jax.random.uniform(kw, (hidden_feats, out_feats), jnp.float32, -bound, bound)
    b_last = jax.random.uniform(kb, (1, out_feats), jnp.float32, -bound, bound)
    affines = []
    for _ in range(n_layers):
        key, ka = jax.random.split(key)
        affines.append(jax.random.uniform(ka, (2, 64), jnp.float32, 0.5, 1.5))
    return {"ws": ws, "w_last": w_last, "b_last": b_last, "affines": affines}, key


if __name__ == "__main__":
    N = 2048           # number of sample points (2 grid steps at tile_n=1024)
    in_feats = 1       # forward implies last dim of x is 1 (Linear(1, hidden))
    hidden_feats = 32
    n_hidden_layers = 2
    out_feats = 4

    key = jax.random.PRNGKey(0)
    params, key = init_params(key, in_feats, hidden_feats, n_hidden_layers, out_feats)
    key, kx = jax.random.split(key)
    x = jax.random.uniform(kx, (N, in_feats), jnp.float32)   # coordinates in [0, 1]

    out = cam_forward_pallas(x, params, tile_n=1024)
    out = jax.block_until_ready(out)

    ref = cam_reference(x, params)
    assert out.shape == (N, out_feats)
    assert jnp.allclose(out, ref, atol=1e-4, rtol=1e-4), "mismatch vs reference"

    print("KERNEL_OK")
</pallas_src>

<mosaic_0001>
module attributes {stable_mosaic.version = 11 : i64} {
  func.func @kernel(%arg0: i32, %arg1: memref<1x1024xf32, #tpu.memory_space<vmem>>, %arg2: memref<6x64xf32, #tpu.memory_space<vmem>>, %arg3: memref<32x4xf32, #tpu.memory_space<vmem>>, %arg4: memref<2x32x32xf32, #tpu.memory_space<vmem>>, %arg5: memref<4x33xf32, #tpu.memory_space<vmem>>, %arg6: memref<4x1024xf32, #tpu.memory_space<vmem>>) attributes {dimension_semantics = [#tpu.dimension_semantics<parallel>], iteration_bounds = array<i64: 2>, scalar_prefetch = 0 : i64, scratch_operands = 0 : i64, tpu.core_type = #tpu.core_type<tc>, window_params = [{transform_indices = @transform_0, window_bounds = array<i64: 1, 1024>}, {pipeline_mode = #tpu.pipeline_mode<synchronous>, transform_indices = @transform_1, window_bounds = array<i64: 6, 64>}, {pipeline_mode = #tpu.pipeline_mode<synchronous>, transform_indices = @transform_2, window_bounds = array<i64: 32, 4>}, {pipeline_mode = #tpu.pipeline_mode<synchronous>, transform_indices = @transform_3, window_bounds = array<i64: 2, 32, 32>}, {pipeline_mode = #tpu.pipeline_mode<synchronous>, transform_indices = @transform_4, window_bounds = array<i64: 4, 33>}, {transform_indices = @transform_5, window_bounds = array<i64: 4, 1024>}]} {
    %c0 = arith.constant 0 : index
    %c0_0 = arith.constant 0 : index
    %0 = vector.load %arg1[%c0, %c0_0] : memref<1x1024xf32, #tpu.memory_space<vmem>>, vector<1x1024xf32>
    %cst = arith.constant 6.300000e+01 : f32
    %1 = vector.broadcast %cst : f32 to vector<1x1024xf32>
    %2 = arith.mulf %0, %1 : vector<1x1024xf32>
    %3 = math.floor %2 : vector<1x1024xf32>
    %4 = arith.subf %2, %3 : vector<1x1024xf32>
    %5 = arith.fptosi %3 : vector<1x1024xf32> to vector<1x1024xi32>
    %6 = tpu.iota {dimensions = array<i32: 0>} : vector<64x1024xi32>
    %7 = vector.broadcast %5 : vector<1x1024xi32> to vector<64x1024xi32>
    %8 = arith.cmpi eq, %6, %7 : vector<64x1024xi32>
    %cst_1 = arith.constant 1.000000e+00 : f32
    %9 = vector.broadcast %cst_1 : f32 to vector<1x1024xf32>
    %10 = arith.subf %9, %4 : vector<1x1024xf32>
    %cst_2 = arith.constant 0.000000e+00 : f32
    %11 = vector.shape_cast %10 : vector<1x1024xf32> to vector<1x1024xf32>
    %12 = vector.broadcast %11 : vector<1x1024xf32> to vector<64x1024xf32>
    %13 = vector.broadcast %cst_2 : f32 to vector<64x1024xf32>
    %14 = arith.select %8, %12, %13 : vector<64x1024xi1>, vector<64x1024xf32>
    %c1_i32 = arith.constant 1 : i32
    %15 = vector.broadcast %c1_i32 : i32 to vector<1x1024xi32>
    %16 = arith.addi %5, %15 : vector<1x1024xi32>
    %17 = vector.broadcast %16 : vector<1x1024xi32> to vector<64x1024xi32>
    %18 = arith.cmpi eq, %6, %17 : vector<64x1024xi32>
    %cst_3 = arith.constant 0.000000e+00 : f32
    %19 = vector.shape_cast %4 : vector<1x1024xf32> to vector<1x1024xf32>
    %20 = vector.broadcast %19 : vector<1x1024xf32> to vector<64x1024xf32>
    %21 = vector.broadcast %cst_3 : f32 to vector<64x1024xf32>
    %22 = arith.select %18, %20, %21 : vector<64x1024xi1>, vector<64x1024xf32>
    %23 = arith.addf %14, %22 : vector<64x1024xf32>
    %c0_4 = arith.constant 0 : index
    %c0_5 = arith.constant 0 : index
    %24 = vector.load %arg2[%c0_4, %c0_5] : memref<6x64xf32, #tpu.memory_space<vmem>>, vector<6x64xf32>
    %cst_6 = arith.constant dense<0.000000e+00> : vector<6x1024xf32>
    %25 = tpu.matmul %24, %23, %cst_6 {dimension_numbers = #tpu.dot_dimension_numbers<[1], [0], [0], [1], [0, 0, 1, 1], [], []>} : vector<6x64xf32>, vector<64x1024xf32>, vector<6x1024xf32> -> vector<6x1024xf32>
    %c0_7 = arith.constant 0 : index
    %c0_8 = arith.constant 0 : index
    %26 = vector.load %arg3[%c0_7, %c0_8] : memref<32x4xf32, #tpu.memory_space<vmem>>, vector<32x4xf32>
    %27 = vector.extract_strided_slice %26 {offsets = [0, 0], sizes = [32, 1], strides = [1, 1]} : vector<32x4xf32> to vector<32x1xf32>
    %28 = vector.broadcast %27 : vector<32x1xf32> to vector<32x1024xf32>
    %29 = vector.broadcast %0 : vector<1x1024xf32> to vector<32x1024xf32>
    %30 = arith.mulf %28, %29 : vector<32x1024xf32>
    %31 = vector.extract_strided_slice %26 {offsets = [0, 1], sizes = [32, 1], strides = [1, 1]} : vector<32x4xf32> to vector<32x1xf32>
    %32 = vector.broadcast %31 : vector<32x1xf32> to vector<32x1024xf32>
    %33 = arith.addf %30, %32 : vector<32x1024xf32>
    %34 = vector.extract_strided_slice %25 {offsets = [0, 0], sizes = [1, 1024], strides = [1, 1]} : vector<6x1024xf32> to vector<1x1024xf32>
    %35 = vector.broadcast %34 : vector<1x1024xf32> to vector<32x1024xf32>
    %36 = arith.mulf %35, %33 : vector<32x1024xf32>
    %37 = vector.extract_strided_slice %25 {offsets = [1, 0], sizes = [1, 1024], strides = [1, 1]} : vector<6x1024xf32> to vector<1x1024xf32>
    %38 = vector.broadcast %37 : vector<1x1024xf32> to vector<32x1024xf32>
    %39 = arith.addf %36, %38 : vector<32x1024xf32>
    %c0_9 = arith.constant 0 : index
    %c0_10 = arith.constant 0 : index
    %c0_11 = arith.constant 0 : index
    %40 = vector.load %arg4[%c0_9, %c0_10, %c0_11] : memref<2x32x32xf32, #tpu.memory_space<vmem>>, vector<1x32x32xf32>
    %41 = vector.shape_cast %40 : vector<1x32x32xf32> to vector<32x32xf32>
    %42 = vector.extract_strided_slice %26 {offsets = [0, 2], sizes = [32, 1], strides = [1, 1]} : vector<32x4xf32> to vector<32x1xf32>
    %cst_12 = arith.constant dense<0.000000e+00> : vector<32x1024xf32>
    %43 = tpu.matmul %41, %39, %cst_12 {dimension_numbers = #tpu.dot_dimension_numbers<[1], [0], [0], [1], [0, 0, 1, 1], [], []>} : vector<32x32xf32>, vector<32x1024xf32>, vector<32x1024xf32> -> vector<32x1024xf32>
    %44 = vector.broadcast %42 : vector<32x1xf32> to vector<32x1024xf32>
    %45 = arith.addf %43, %44 : vector<32x1024xf32>
    %46 = vector.extract_strided_slice %25 {offsets = [2, 0], sizes = [1, 1024], strides = [1, 1]} : vector<6x1024xf32> to vector<1x1024xf32>
    %47 = vector.broadcast %46 : vector<1x1024xf32> to vector<32x1024xf32>
    %48 = arith.mulf %47, %45 : vector<32x1024xf32>
    %49 = vector.extract_strided_slice %25 {offsets = [3, 0], sizes = [1, 1024], strides = [1, 1]} : vector<6x1024xf32> to vector<1x1024xf32>
    %50 = vector.broadcast %49 : vector<1x1024xf32> to vector<32x1024xf32>
    %51 = arith.addf %48, %50 : vector<32x1024xf32>
    %c1 = arith.constant 1 : index
    %c0_13 = arith.constant 0 : index
    %c0_14 = arith.constant 0 : index
    %52 = vector.load %arg4[%c1, %c0_13, %c0_14] : memref<2x32x32xf32, #tpu.memory_space<vmem>>, vector<1x32x32xf32>
    %53 = vector.shape_cast %52 : vector<1x32x32xf32> to vector<32x32xf32>
    %54 = vector.extract_strided_slice %26 {offsets = [0, 3], sizes = [32, 1], strides = [1, 1]} : vector<32x4xf32> to vector<32x1xf32>
    %cst_15 = arith.constant dense<0.000000e+00> : vector<32x1024xf32>
    %55 = tpu.matmul %53, %51, %cst_15 {dimension_numbers = #tpu.dot_dimension_numbers<[1], [0], [0], [1], [0, 0, 1, 1], [], []>} : vector<32x32xf32>, vector<32x1024xf32>, vector<32x1024xf32> -> vector<32x1024xf32>
    %56 = vector.broadcast %54 : vector<32x1xf32> to vector<32x1024xf32>
    %57 = arith.addf %55, %56 : vector<32x1024xf32>
    %58 = vector.extract_strided_slice %25 {offsets = [4, 0], sizes = [1, 1024], strides = [1, 1]} : vector<6x1024xf32> to vector<1x1024xf32>
    %59 = vector.broadcast %58 : vector<1x1024xf32> to vector<32x1024xf32>
    %60 = arith.mulf %59, %57 : vector<32x1024xf32>
    %61 = vector.extract_strided_slice %25 {offsets = [5, 0], sizes = [1, 1024], strides = [1, 1]} : vector<6x1024xf32> to vector<1x1024xf32>
    %62 = vector.broadcast %61 : vector<1x1024xf32> to vector<32x1024xf32>
    %63 = arith.addf %60, %62 : vector<32x1024xf32>
    %c0_16 = arith.constant 0 : index
    %c0_17 = arith.constant 0 : index
    %64 = vector.load %arg5[%c0_16, %c0_17] : memref<4x33xf32, #tpu.memory_space<vmem>>, vector<4x33xf32>
    %65 = vector.extract_strided_slice %64 {offsets = [0, 0], sizes = [4, 32], strides = [1, 1]} : vector<4x33xf32> to vector<4x32xf32>
    %cst_18 = arith.constant dense<0.000000e+00> : vector<4x1024xf32>
    %66 = tpu.matmul %65, %63, %cst_18 {dimension_numbers = #tpu.dot_dimension_numbers<[1], [0], [0], [1], [0, 0, 1, 1], [], []>} : vector<4x32xf32>, vector<32x1024xf32>, vector<4x1024xf32> -> vector<4x1024xf32>
    %67 = vector.extract_strided_slice %64 {offsets = [0, 32], sizes = [4, 1], strides = [1, 1]} : vector<4x33xf32> to vector<4x1xf32>
    %68 = vector.broadcast %67 : vector<4x1xf32> to vector<4x1024xf32>
    %69 = arith.addf %66, %68 : vector<4x1024xf32>
    %c0_19 = arith.constant 0 : index
    %c0_20 = arith.constant 0 : index
    %70 = vector.load %arg6[%c0_19, %c0_20] : memref<4x1024xf32, #tpu.memory_space<vmem>>, vector<4x1024xf32>
    tpu.vector_store %arg6[%c0_19, %c0_20], %69 {strides = array<i32>} : memref<4x1024xf32, #tpu.memory_space<vmem>>, vector<4x1024xf32>,
    return
  }
  func.func @transform_0(%arg0: i32) -> (i32, i32) {
    %c0_i32 = arith.constant 0 : i32
    %c0_i32_0 = arith.constant 0 : i32
    return %c0_i32, %arg0 : i32, i32
  }
  func.func @transform_1(%arg0: i32) -> (i32, i32) {
    %c0_i32 = arith.constant 0 : i32
    %c0_i32_0 = arith.constant 0 : i32
    %c0_i32_1 = arith.constant 0 : i32
    return %c0_i32, %c0_i32_0 : i32, i32
  }
  func.func @transform_2(%arg0: i32) -> (i32, i32) {
    %c0_i32 = arith.constant 0 : i32
    %c0_i32_0 = arith.constant 0 : i32
    %c0_i32_1 = arith.constant 0 : i32
    return %c0_i32, %c0_i32_0 : i32, i32
  }
  func.func @transform_3(%arg0: i32) -> (i32, i32, i32) {
    %c0_i32 = arith.constant 0 : i32
    %c0_i32_0 = arith.constant 0 : i32
    %c0_i32_1 = arith.constant 0 : i32
    %c0_i32_2 = arith.constant 0 : i32
    return %c0_i32, %c0_i32_0, %c0_i32_1 : i32, i32, i32
  }
  func.func @transform_4(%arg0: i32) -> (i32, i32) {
    %c0_i32 = arith.constant 0 : i32
    %c0_i32_0 = arith.constant 0 : i32
    %c0_i32_1 = arith.constant 0 : i32
    return %c0_i32, %c0_i32_0 : i32, i32
  }
  func.func @transform_5(%arg0: i32) -> (i32, i32) {
    %c0_i32 = arith.constant 0 : i32
    %c0_i32_0 = arith.constant 0 : i32
    return %c0_i32, %arg0 : i32, i32
  }
}

</mosaic_0001>

<llo_original>
// kernel: tpu_custom_call.1
$region0: #{tpu_custom_call.1}
  #allocation0 [shape = 'u32[]', space=smem, size = 0x4, offset = 0x4, fixed_abs, tag = 'smem constant byte address 0x4 - core index']
  #allocation1 [shape = 'u32[144,128]{1,0:T(1,128)}', space=vmem, size = 0x12000, scoped, tag = 'internal scratch']
  %s0 = inlined_call_operand.vmem [shape: f32[1,2048], index: 0, kind: input, shape index: {}]
  %s1 = inlined_call_operand.vmem [shape: f32[6,64], index: 1, kind: input, shape index: {}]
  %s2 = inlined_call_operand.vmem [shape: f32[32,4], index: 2, kind: input, shape index: {}]
  %s3 = inlined_call_operand.hbm [shape: f32[2,32,32], index: 3, kind: input, shape index: {}]
  %s4 = inlined_call_operand.vmem [shape: f32[4,33], index: 4, kind: input, shape index: {}]
  %s5 = inlined_call_operand.hbm [shape: f32[4,2048], index: 5, kind: output, shape index: {}]
  %s6 = sld [smem:[#allocation0]]
  $region57: #{tpu_custom_call.1} parent=0
    _
  %s8 = ssub.s32 1, %s6
  %s9 = scalar_select 0, %s8, %s6
  $region1: #{tpu_custom_call.1} parent=0
    #allocation2 [shape = 'u8[32768]{0}', space=vmem, size = 0x8000, scoped, tag = 'input window, operand 3, single buffered']
    #allocation3 [shape = 's32[2]{0}', space=sflag, size = 0x8, scoped, tag = 'scoped memory for tpu_custom_call.1']
    #allocation4 [shape = 's32[2]{0}', space=sflag, size = 0x8, scoped, tag = 'scoped memory for tpu_custom_call.1']
    #allocation5 [shape = 'u8[32768]{0}', space=vmem, size = 0x8000, scoped, tag = 'output window, operand 0']
    %10 = vsyncpa [#allocation3], 0
    %11 = vsyncpa [#allocation4], 0
    %s12 = scalar_lea.sflag [#allocation4], 1
    %13 = vsyncpa %s12, 0
    loop: start=0, step=1, limit=4
    $region2: #{tpu_custom_call.1} parent=1 // loop_pre_header
      _
    $region3: #{tpu_custom_call.1} parent=1 // loop_header
      %s15 = sphi 0, %s19
      %p16 = scmp.ge.s32.totalorder %s15, 4
      %s25 = sphi 0, %s27
      %s28 = sphi 0, %s25
      %s29 = sphi 0, %s28
      %s45 = sphi 0, %s29
      %s49 = sphi 0, %s49
      %s51 = sphi 0, %s49
      %s52 = sphi 0, %s51
      %s66 = sphi 0, %s52
      %s70 = sphi 0, %s70
      %s72 = sphi 0, %s70
      %s73 = sphi 0, %s72
      %s87 = sphi 0, %s73
      %s91 = sphi 0, %s91
      %s93 = sphi 0, %s91
      %s94 = sphi 0, %s93
      %s108 = sphi 0, %s94
      %s112 = sphi 0, %s112
      %s114 = sphi 0, %s112
      %s115 = sphi 0, %s114
      %s129 = sphi 0, %s115
      %s135 = sphi 0, %s137
      %s138 = sphi 0, %s135
      %s139 = sphi 0, %s138
      %s155 = sphi 0, %s139
    $region4: #{tpu_custom_call.1} parent=1 // loop_header_branch
      %18 = sbr.rel (%p16) target = $region8
    $region5: #{tpu_custom_call.1} parent=1 // loop_body
      %s20 = ssub.s32 %s15, 1
      %s21 = ssub.s32 %s15, 2
      %s22 = sadd.s32 %s15, 1
      %s23 = ssub.s32 %s15, %s22
      %p24 = scmp.eq.s32.totalorder %s23, 0
      %s26 = sadd.s32 %s25, 1
      %s27 = scalar_select %p24, %s25, %s26
      %p30 = pneg %p24
      %p31 = scmp.eq.s32.totalorder %s15, 1
      %p32 = por %p30, %p31
      %p33 = scmp.ne.s32.totalorder %s25, %s28
      %p34 = scmp.eq.s32.totalorder %s15, 0
      %p35 = por %p33, %p34
      %p36 = scmp.ne.s32.totalorder %s25, %s28
      %p37 = scmp.eq.s32.totalorder %s20, 1
      %p38 = por %p36, %p37
      %p39 = scmp.ne.s32.totalorder %s28, %s29
      %p40 = scmp.eq.s32.totalorder %s20, 0
      %p41 = por %p39, %p40
      %p42 = scmp.ne.s32.totalorder %s28, %s29
      %p43 = scmp.eq.s32.totalorder %s21, 1
      %p44 = por %p42, %p43
      %p46 = scmp.ne.s32.totalorder %s29, %s45
      %p47 = scmp.eq.s32.totalorder %s21, 0
      %p48 = por %p46, %p47
      %s50 = sadd.s32 %s49, 1
      %p53 = scmp.eq.s32.totalorder %s15, 1
      %p54 = scmp.ne.s32.totalorder %s49, %s51
      %p55 = scmp.eq.s32.totalorder %s15, 0
      %p56 = por %p54, %p55
      %p57 = scmp.ne.s32.totalorder %s49, %s51
      %p58 = scmp.eq.s32.totalorder %s20, 1
      %p59 = por %p57, %p58
      %p60 = scmp.ne.s32.totalorder %s51, %s52
      %p61 = scmp.eq.s32.totalorder %s20, 0
      %p62 = por %p60, %p61
      %p63 = scmp.ne.s32.totalorder %s51, %s52
      %p64 = scmp.eq.s32.totalorder %s21, 1
      %p65 = por %p63, %p64
      %p67 = scmp.ne.s32.totalorder %s52, %s66
      %p68 = scmp.eq.s32.totalorder %s21, 0
      %p69 = por %p67, %p68
      %s71 = sadd.s32 %s70, 1
      %p74 = scmp.eq.s32.totalorder %s15, 1
      %p75 = scmp.ne.s32.totalorder %s70, %s72
      %p76 = scmp.eq.s32.totalorder %s15, 0
      %p77 = por %p75, %p76
      %p78 = scmp.ne.s32.totalorder %s70, %s72
      %p79 = scmp.eq.s32.totalorder %s20, 1
      %p80 = por %p78, %p79
      %p81 = scmp.ne.s32.totalorder %s72, %s73
      %p82 = scmp.eq.s32.totalorder %s20, 0
      %p83 = por %p81, %p82
      %p84 = scmp.ne.s32.totalorder %s72, %s73
      %p85 = scmp.eq.s32.totalorder %s21, 1
      %p86 = por %p84, %p85
      %p88 = scmp.ne.s32.totalorder %s73, %s87
      %p89 = scmp.eq.s32.totalorder %s21, 0
      %p90 = por %p88, %p89
      %s92 = sadd.s32 %s91, 1
      %p95 = scmp.eq.s32.totalorder %s15, 1
      %p96 = scmp.ne.s32.totalorder %s91, %s93
      %p97 = scmp.eq.s32.totalorder %s15, 0
      %p98 = por %p96, %p97
      %p99 = scmp.ne.s32.totalorder %s91, %s93
      %p100 = scmp.eq.s32.totalorder %s20, 1
      %p101 = por %p99, %p100
      %p102 = scmp.ne.s32.totalorder %s93, %s94
      %p103 = scmp.eq.s32.totalorder %s20, 0
      %p104 = por %p102, %p103
      %p105 = scmp.ne.s32.totalorder %s93, %s94
      %p106 = scmp.eq.s32.totalorder %s21, 1
      %p107 = por %p105, %p106
      %p109 = scmp.ne.s32.totalorder %s94, %s108
      %p110 = scmp.eq.s32.totalorder %s21, 0
      %p111 = por %p109, %p110
      %s113 = sadd.s32 %s112, 1
      %p116 = scmp.eq.s32.totalorder %s15, 1
      %p117 = scmp.ne.s32.totalorder %s112, %s114
      %p118 = scmp.eq.s32.totalorder %s15, 0
      %p119 = por %p117, %p118
      %p120 = scmp.ne.s32.totalorder %s112, %s114
      %p121 = scmp.eq.s32.totalorder %s20, 1
      %p122 = por %p120, %p121
      %p123 = scmp.ne.s32.totalorder %s114, %s115
      %p124 = scmp.eq.s32.totalorder %s20, 0
      %p125 = por %p123, %p124
      %p126 = scmp.ne.s32.totalorder %s114, %s115
      %p127 = scmp.eq.s32.totalorder %s21, 1
      %p128 = por %p126, %p127
      %p130 = scmp.ne.s32.totalorder %s115, %s129
      %p131 = scmp.eq.s32.totalorder %s21, 0
      %p132 = por %p130, %p131
      %s133 = ssub.s32 %s15, %s22
      %p134 = scmp.eq.s32.totalorder %s133, 0
      %s136 = sadd.s32 %s135, 1
      %s137 = scalar_select %p134, %s135, %s136
      %p140 = pneg %p134
      %p141 = scmp.eq.s32.totalorder %s15, 1
      %p142 = por %p140, %p141
      %p143 = scmp.ne.s32.totalorder %s135, %s138
      %p144 = scmp.eq.s32.totalorder %s15, 0
      %p145 = por %p143, %p144
      %p146 = scmp.ne.s32.totalorder %s135, %s138
      %p147 = scmp.eq.s32.totalorder %s20, 1
      %p148 = por %p146, %p147
      %p149 = scmp.ne.s32.totalorder %s138, %s139
      %p150 = scmp.eq.s32.totalorder %s20, 0
      %p151 = por %p149, %p150
      %p152 = scmp.ne.s32.totalorder %s138, %s139
      %p153 = scmp.eq.s32.totalorder %s21, 1
      %p154 = por %p152, %p153
      %p156 = scmp.ne.s32.totalorder %s139, %s155
      %p157 = scmp.eq.s32.totalorder %s21, 0
      %p158 = por %p156, %p157
      %p159 = scmp.le.s32.totalorder 1, %s15
      %p160 = scmp.lt.s32.totalorder %s15, 3
      %p161 = pnand %p159, %p160
      %p162 = pneg %p161
      // Predicated region
      $region9: #{tpu_custom_call.1} parent=5 // pred_check
        _
      $region10: #{tpu_custom_call.1} parent=5 // pred_check_branch
        %164 = sbr.rel (%p161) target = $region12
      $region11: #{tpu_custom_call.1} parent=5 // pred_region
        %s165 = ssub.s32 %s15, 1
        // Predicated region
        $region13: #{tpu_custom_call.1} parent=11 // pred_check
          %p166 = pneg %p62
        $region14: #{tpu_custom_call.1} parent=11 // pred_check_branch
          %168 = sbr.rel (%p166) target = $region16
        $region15: #{tpu_custom_call.1} parent=11 // pred_region
          _
        $region16: #{tpu_custom_call.1} parent=11 // pred_fallthru
          _
        // Predicated region
        $region17: #{tpu_custom_call.1} parent=11 // pred_check
          %p169 = pneg %p83
        $region18: #{tpu_custom_call.1} parent=11 // pred_check_branch
          %171 = sbr.rel (%p169) target = $region20
        $region19: #{tpu_custom_call.1} parent=11 // pred_region
          _
        $region20: #{tpu_custom_call.1} parent=11 // pred_fallthru
          _
        // Predicated region
        $region21: #{tpu_custom_call.1} parent=11 // pred_check
          %p172 = pneg %p104
        $region22: #{tpu_custom_call.1} parent=11 // pred_check_branch
          %174 = sbr.rel (%p172) target = $region24
        $region23: #{tpu_custom_call.1} parent=11 // pred_region
          %s176 = ssub.s32 1024, 1024
          %177 = vsyncadd [#allocation3], %s176
          %s178 = sshll.u32 [#allocation2], 4
          %s179 = int_to_ptr.vmem [resolvable:$true] %s178
          %184 = dma.hbm_to_vmem [thread:$0]  %s3, 1024, %s179, [#allocation3], 128, 128, 8
        $region24: #{tpu_custom_call.1} parent=11 // pred_fallthru
          _
        // Predicated region
        $region25: #{tpu_custom_call.1} parent=11 // pred_check
          %p185 = pneg %p125
        $region26: #{tpu_custom_call.1} parent=11 // pred_check_branch
          %187 = sbr.rel (%p185) target = $region28
        $region27: #{tpu_custom_call.1} parent=11 // pred_region
          _
        $region28: #{tpu_custom_call.1} parent=11 // pred_fallthru
          _
      $region12: #{tpu_custom_call.1} parent=5 // pred_fallthru
        _
      %p188 = scmp.lt.s32.totalorder %s15, 2
      // Predicated region
      $region29: #{tpu_custom_call.1} parent=5 // pred_check
        %p189 = pneg %p188
      $region30: #{tpu_custom_call.1} parent=5 // pred_check_branch
        %191 = sbr.rel (%p189) target = $region32
      $region31: #{tpu_custom_call.1} parent=5 // pred_region
        // Predicated region
        $region33: #{tpu_custom_call.1} parent=31 // pred_check
          %p192 = pneg %p35
        $region34: #{tpu_custom_call.1} parent=31 // pred_check_branch
          %194 = sbr.rel (%p192) target = $region36
        $region35: #{tpu_custom_call.1} parent=31 // pred_region
          %s195 = smul.u32 8, %s15
          %p196 = scmp.lt.s32.totalorder %s195, 15
          %s197 = scalar_select %p196, %s195, 15
          %s198 = scalar_lea.vmem %s0, %s197
          %s199 = smul.u32 8, %s15
        $region36: #{tpu_custom_call.1} parent=31 // pred_fallthru
          _
      $region32: #{tpu_custom_call.1} parent=5 // pred_fallthru
        _
      %p200 = scmp.le.s32.totalorder 1, %s15
      %p201 = scmp.lt.s32.totalorder %s15, 3
      %p202 = pnand %p200, %p201
      %p203 = pneg %p202
      // Predicated region
      $region37: #{tpu_custom_call.1} parent=5 // pred_check
        _
      $region38: #{tpu_custom_call.1} parent=5 // pred_check_branch
        %205 = sbr.rel (%p202) target = $region40
      $region39: #{tpu_custom_call.1} parent=5 // pred_region
        %s206 = ssub.s32 %s15, 1
        // Predicated region
        $region41: #{tpu_custom_call.1} parent=39 // pred_check
          %p207 = pneg %p104
        $region42: #{tpu_custom_call.1} parent=39 // pred_check_branch
          %209 = sbr.rel (%p207) target = $region44
        $region43: #{tpu_custom_call.1} parent=39 // pred_region
          %210 = dma.done [#allocation3], 1024
        $region44: #{tpu_custom_call.1} parent=39 // pred_fallthru
          _
        %s211 = smul.u32 8, %s20
        %p212 = scmp.lt.s32.totalorder %s211, 15
        %s213 = scalar_select %p212, %s211, 15
        %s214 = scalar_lea.vmem %s0, %s213
        %p215 = pneg %p41
        %p216 = pneg %p38
        %p217 = pneg %p62
        %p218 = pneg %p59
        %p219 = pneg %p83
        %p220 = pneg %p80
        %p221 = pneg %p104
        %p222 = pneg %p101
        %p223 = pneg %p125
        %p224 = pneg %p122
        %p225 = pneg %p151
        %p226 = pneg %p148
        %s227 = sand.u32 %s138, 1
        %s228 = scalar_lea.sflag [#allocation4], %s227
        %s229 = sand.u32 %s138, 1
        %s230 = smul.addr %s229, 32
        %s231 = scalar_lea.vmem [#allocation5], %s230
        %s232 = smul.u32 8, %s20
        %p233 = scmp.lt.s32.totalorder %s232, 15
        %s234 = scalar_select %p233, %s232, 15
        %s235 = scalar_lea.vmem %s0, %s234
        %s236 = smul.u32 8, %s20
        %s237 = smul.u32 8, %s20
        %v238 = vld [vmem:[%s235] sm:$0xff]
        %v239 = vmul.f32 %v238, 63.0
        %v240 = vfloor.f32 %v239
        %v241 = vsub.f32 %v239, %v240
        %v242 = vcvt.f32.s32.to.zero.pseudo %v240
        %v243 = vlaneseq
        %v244 = vshrl.u32 %v243, 7
        %v245 = vadd.s32 %v244, 8
        %v246 = vadd.s32 %v244, 16
        %v247 = vadd.s32 %v244, 24
        %v248 = vadd.s32 %v244, 32
        %v249 = vadd.s32 %v244, 40
        %v250 = vadd.s32 %v244, 48
        %v251 = vadd.s32 %v244, 56
        %v252 = vlaneseq
        %v253 = vshrl.u32 %v252, 7
        %v254 = vsub.s32 0, %v253
        %v255 = vrot.slane %v242, %v254
        %v256 = vlaneseq
        %v257 = vshrl.u32 %v256, 7
        %v258 = vsub.s32 1, %v257
        %v259 = vrot.slane %v242, %v258
        %v260 = vlaneseq
        %v261 = vshrl.u32 %v260, 7
        %v262 = vsub.s32 2, %v261
        %v263 = vrot.slane %v242, %v262
        %v264 = vlaneseq
        %v265 = vshrl.u32 %v264, 7
        %v266 = vsub.s32 3, %v265
        %v267 = vrot.slane %v242, %v266
        %v268 = vlaneseq
        %v269 = vshrl.u32 %v268, 7
        %v270 = vsub.s32 4, %v269
        %v271 = vrot.slane %v242, %v270
        %v272 = vlaneseq
        %v273 = vshrl.u32 %v272, 7
        %v274 = vsub.s32 5, %v273
        %v275 = vrot.slane %v242, %v274
        %v276 = vlaneseq
        %v277 = vshrl.u32 %v276, 7
        %v278 = vsub.s32 6, %v277
        %v279 = vrot.slane %v242, %v278
        %v280 = vlaneseq
        %v281 = vshrl.u32 %v280, 7
        %v282 = vsub.s32 7, %v281
        %v283 = vrot.slane %v242, %v282
        %vm284 = vcmp.eq.s32.totalorder %v244, %v255
        %vm285 = vcmp.eq.s32.totalorder %v244, %v259
        %vm286 = vcmp.eq.s32.totalorder %v244, %v263
        %vm287 = vcmp.eq.s32.totalorder %v244, %v267
        %vm288 = vcmp.eq.s32.totalorder %v244, %v271
        %vm289 = vcmp.eq.s32.totalorder %v244, %v275
        %vm290 = vcmp.eq.s32.totalorder %v244, %v279
        %vm291 = vcmp.eq.s32.totalorder %v244, %v283
        %vm292 = vcmp.eq.s32.totalorder %v245, %v255
        %vm293 = vcmp.eq.s32.totalorder %v245, %v259
        %vm294 = vcmp.eq.s32.totalorder %v245, %v263
        %vm295 = vcmp.eq.s32.totalorder %v245, %v267
        %vm296 = vcmp.eq.s32.totalorder %v245, %v271
        %vm297 = vcmp.eq.s32.totalorder %v245, %v275
        %vm298 = vcmp.eq.s32.totalorder %v245, %v279
        %vm299 = vcmp.eq.s32.totalorder %v245, %v283
        %vm300 = vcmp.eq.s32.totalorder %v246, %v255
        %vm301 = vcmp.eq.s32.totalorder %v246, %v259
        %vm302 = vcmp.eq.s32.totalorder %v246, %v263
        %vm303 = vcmp.eq.s32.totalorder %v246, %v267
        %vm304 = vcmp.eq.s32.totalorder %v246, %v271
        %vm305 = vcmp.eq.s32.totalorder %v246, %v275
        %vm306 = vcmp.eq.s32.totalorder %v246, %v279
        %vm307 = vcmp.eq.s32.totalorder %v246, %v283
        %vm308 = vcmp.eq.s32.totalorder %v247, %v255
        %vm309 = vcmp.eq.s32.totalorder %v247, %v259
        %vm310 = vcmp.eq.s32.totalorder %v247, %v263
        %vm311 = vcmp.eq.s32.totalorder %v247, %v267
        %vm312 = vcmp.eq.s32.totalorder %v247, %v271
        %vm313 = vcmp.eq.s32.totalorder %v247, %v275
        %vm314 = vcmp.eq.s32.totalorder %v247, %v279
        %vm315 = vcmp.eq.s32.totalorder %v247, %v283
        %vm316 = vcmp.eq.s32.totalorder %v248, %v255
        %vm317 = vcmp.eq.s32.totalorder %v248, %v259
        %vm318 = vcmp.eq.s32.totalorder %v248, %v263
        %vm319 = vcmp.eq.s32.totalorder %v248, %v267
        %vm320 = vcmp.eq.s32.totalorder %v248, %v271
        %vm321 = vcmp.eq.s32.totalorder %v248, %v275
        %vm322 = vcmp.eq.s32.totalorder %v248, %v279
        %vm323 = vcmp.eq.s32.totalorder %v248, %v283
        %vm324 = vcmp.eq.s32.totalorder %v249, %v255
        %vm325 = vcmp.eq.s32.totalorder %v249, %v259
        %vm326 = vcmp.eq.s32.totalorder %v249, %v263
        %vm327 = vcmp.eq.s32.totalorder %v249, %v267
        %vm328 = vcmp.eq.s32.totalorder %v249, %v271
        %vm329 = vcmp.eq.s32.totalorder %v249, %v275
        %vm330 = vcmp.eq.s32.totalorder %v249, %v279
        %vm331 = vcmp.eq.s32.totalorder %v249, %v283
        %vm332 = vcmp.eq.s32.totalorder %v250, %v255
        %vm333 = vcmp.eq.s32.totalorder %v250, %v259
        %vm334 = vcmp.eq.s32.totalorder %v250, %v263
        %vm335 = vcmp.eq.s32.totalorder %v250, %v267
        %vm336 = vcmp.eq.s32.totalorder %v250, %v271
        %vm337 = vcmp.eq.s32.totalorder %v250, %v275
        %vm338 = vcmp.eq.s32.totalorder %v250, %v279
        %vm339 = vcmp.eq.s32.totalorder %v250, %v283
        %vm340 = vcmp.eq.s32.totalorder %v251, %v255
        %vm341 = vcmp.eq.s32.totalorder %v251, %v259
        %vm342 = vcmp.eq.s32.totalorder %v251, %v263
        %vm343 = vcmp.eq.s32.totalorder %v251, %v267
        %vm344 = vcmp.eq.s32.totalorder %v251, %v271
        %vm345 = vcmp.eq.s32.totalorder %v251, %v275
        %vm346 = vcmp.eq.s32.totalorder %v251, %v279
        %vm347 = vcmp.eq.s32.totalorder %v251, %v283
        %v348 = vsub.f32 1.0, %v241
        %v350 = vlaneseq
        %v351 = vshrl.u32 %v350, 7
        %v352 = vsub.s32 0, %v351
        %v353 = vrot.slane %v348, %v352
        %v354 = vlaneseq
        %v355 = vshrl.u32 %v354, 7
        %v356 = vsub.s32 1, %v355
        %v357 = vrot.slane %v348, %v356
        %v358 = vlaneseq
        %v359 = vshrl.u32 %v358, 7
        %v360 = vsub.s32 2, %v359
        %v361 = vrot.slane %v348, %v360
        %v362 = vlaneseq
        %v363 = vshrl.u32 %v362, 7
        %v364 = vsub.s32 3, %v363
        %v365 = vrot.slane %v348, %v364
        %v366 = vlaneseq
        %v367 = vshrl.u32 %v366, 7
        %v368 = vsub.s32 4, %v367
        %v369 = vrot.slane %v348, %v368
        %v370 = vlaneseq
        %v371 = vshrl.u32 %v370, 7
        %v372 = vsub.s32 5, %v371
        %v373 = vrot.slane %v348, %v372
        %v374 = vlaneseq
        %v375 = vshrl.u32 %v374, 7
        %v376 = vsub.s32 6, %v375
        %v377 = vrot.slane %v348, %v376
        %v378 = vlaneseq
        %v379 = vshrl.u32 %v378, 7
        %v380 = vsub.s32 7, %v379
        %v381 = vrot.slane %v348, %v380
        %v390 = vsel %vm284, %v353, 0.0
        %v391 = vsel %vm285, %v357, 0.0
        %v392 = vsel %vm286, %v361, 0.0
        %v393 = vsel %vm287, %v365, 0.0
        %v394 = vsel %vm288, %v369, 0.0
        %v395 = vsel %vm289, %v373, 0.0
        %v396 = vsel %vm290, %v377, 0.0
        %v397 = vsel %vm291, %v381, 0.0
        %v398 = vsel %vm292, %v353, 0.0
        %v399 = vsel %vm293, %v357, 0.0
        %v400 = vsel %vm294, %v361, 0.0
        %v401 = vsel %vm295, %v365, 0.0
        %v402 = vsel %vm296, %v369, 0.0
        %v403 = vsel %vm297, %v373, 0.0
        %v404 = vsel %vm298, %v377, 0.0
        %v405 = vsel %vm299, %v381, 0.0
        %v406 = vsel %vm300, %v353, 0.0
        %v407 = vsel %vm301, %v357, 0.0
        %v408 = vsel %vm302, %v361, 0.0
        %v409 = vsel %vm303, %v365, 0.0
        %v410 = vsel %vm304, %v369, 0.0
        %v411 = vsel %vm305, %v373, 0.0
        %v412 = vsel %vm306, %v377, 0.0
        %v413 = vsel %vm307, %v381, 0.0
        %v414 = vsel %vm308, %v353, 0.0
        %v415 = vsel %vm309, %v357, 0.0
        %v416 = vsel %vm310, %v361, 0.0
        %v417 = vsel %vm311, %v365, 0.0
        %v418 = vsel %vm312, %v369, 0.0
        %v419 = vsel %vm313, %v373, 0.0
        %v420 = vsel %vm314, %v377, 0.0
        %v421 = vsel %vm315, %v381, 0.0
        %v422 = vsel %vm316, %v353, 0.0
        %v423 = vsel %vm317, %v357, 0.0
        %v424 = vsel %vm318, %v361, 0.0
        %v425 = vsel %vm319, %v365, 0.0
        %v426 = vsel %vm320, %v369, 0.0
        %v427 = vsel %vm321, %v373, 0.0
        %v428 = vsel %vm322, %v377, 0.0
        %v429 = vsel %vm323, %v381, 0.0
        %v430 = vsel %vm324, %v353, 0.0
        %v431 = vsel %vm325, %v357, 0.0
        %v432 = vsel %vm326, %v361, 0.0
        %v433 = vsel %vm327, %v365, 0.0
        %v434 = vsel %vm328, %v369, 0.0
        %v435 = vsel %vm329, %v373, 0.0
        %v436 = vsel %vm330, %v377, 0.0
        %v437 = vsel %vm331, %v381, 0.0
        %v438 = vsel %vm332, %v353, 0.0
        %v439 = vsel %vm333, %v357, 0.0
        %v440 = vsel %vm334, %v361, 0.0
        %v441 = vsel %vm335, %v365, 0.0
        %v442 = vsel %vm336, %v369, 0.0
        %v443 = vsel %vm337, %v373, 0.0
        %v444 = vsel %vm338, %v377, 0.0
        %v445 = vsel %vm339, %v381, 0.0
        %v446 = vsel %vm340, %v353, 0.0
        %v447 = vsel %vm341, %v357, 0.0
        %v448 = vsel %vm342, %v361, 0.0
        %v449 = vsel %vm343, %v365, 0.0
        %v450 = vsel %vm344, %v369, 0.0
        %v451 = vsel %vm345, %v373, 0.0
        %v452 = vsel %vm346, %v377, 0.0
        %v453 = vsel %vm347, %v381, 0.0
        %v454 = vadd.s32 %v242, 1
        %v455 = vlaneseq
        %v456 = vshrl.u32 %v455, 7
        %v457 = vsub.s32 0, %v456
        %v458 = vrot.slane %v454, %v457
        %v459 = vlaneseq
        %v460 = vshrl.u32 %v459, 7
        %v461 = vsub.s32 1, %v460
        %v462 = vrot.slane %v454, %v461
        %v463 = vlaneseq
        %v464 = vshrl.u32 %v463, 7
        %v465 = vsub.s32 2, %v464
        %v466 = vrot.slane %v454, %v465
        %v467 = vlaneseq
        %v468 = vshrl.u32 %v467, 7
        %v469 = vsub.s32 3, %v468
        %v470 = vrot.slane %v454, %v469
        %v471 = vlaneseq
        %v472 = vshrl.u32 %v471, 7
        %v473 = vsub.s32 4, %v472
        %v474 = vrot.slane %v454, %v473
        %v475 = vlaneseq
        %v476 = vshrl.u32 %v475, 7
        %v477 = vsub.s32 5, %v476
        %v478 = vrot.slane %v454, %v477
        %v479 = vlaneseq
        %v480 = vshrl.u32 %v479, 7
        %v481 = vsub.s32 6, %v480
        %v482 = vrot.slane %v454, %v481
        %v483 = vlaneseq
        %v484 = vshrl.u32 %v483, 7
        %v485 = vsub.s32 7, %v484
        %v486 = vrot.slane %v454, %v485
        %vm487 = vcmp.eq.s32.totalorder %v244, %v458
        %vm488 = vcmp.eq.s32.totalorder %v244, %v462
        %vm489 = vcmp.eq.s32.totalorder %v244, %v466
        %vm490 = vcmp.eq.s32.totalorder %v244, %v470
        %vm491 = vcmp.eq.s32.totalorder %v244, %v474
        %vm492 = vcmp.eq.s32.totalorder %v244, %v478
        %vm493 = vcmp.eq.s32.totalorder %v244, %v482
        %vm494 = vcmp.eq.s32.totalorder %v244, %v486
        %vm495 = vcmp.eq.s32.totalorder %v245, %v458
        %vm496 = vcmp.eq.s32.totalorder %v245, %v462
        %vm497 = vcmp.eq.s32.totalorder %v245, %v466
        %vm498 = vcmp.eq.s32.totalorder %v245, %v470
        %vm499 = vcmp.eq.s32.totalorder %v245, %v474
        %vm500 = vcmp.eq.s32.totalorder %v245, %v478
        %vm501 = vcmp.eq.s32.totalorder %v245, %v482
        %vm502 = vcmp.eq.s32.totalorder %v245, %v486
        %vm503 = vcmp.eq.s32.totalorder %v246, %v458
        %vm504 = vcmp.eq.s32.totalorder %v246, %v462
        %vm505 = vcmp.eq.s32.totalorder %v246, %v466
        %vm506 = vcmp.eq.s32.totalorder %v246, %v470
        %vm507 = vcmp.eq.s32.totalorder %v246, %v474
        %vm508 = vcmp.eq.s32.totalorder %v246, %v478
        %vm509 = vcmp.eq.s32.totalorder %v246, %v482
        %vm510 = vcmp.eq.s32.totalorder %v246, %v486
        %vm511 = vcmp.eq.s32.totalorder %v247, %v458
        %vm512 = vcmp.eq.s32.totalorder %v247, %v462
        %vm513 = vcmp.eq.s32.totalorder %v247, %v466
        %vm514 = vcmp.eq.s32.totalorder %v247, %v470
        %vm515 = vcmp.eq.s32.totalorder %v247, %v474
        %vm516 = vcmp.eq.s32.totalorder %v247, %v478
        %vm517 = vcmp.eq.s32.totalorder %v247, %v482
        %vm518 = vcmp.eq.s32.totalorder %v247, %v486
        %vm519 = vcmp.eq.s32.totalorder %v248, %v458
        %vm520 = vcmp.eq.s32.totalorder %v248, %v462
        %vm521 = vcmp.eq.s32.totalorder %v248, %v466
        %vm522 = vcmp.eq.s32.totalorder %v248, %v470
        %vm523 = vcmp.eq.s32.totalorder %v248, %v474
        %vm524 = vcmp.eq.s32.totalorder %v248, %v478
        %vm525 = vcmp.eq.s32.totalorder %v248, %v482
        %vm526 = vcmp.eq.s32.totalorder %v248, %v486
        %vm527 = vcmp.eq.s32.totalorder %v249, %v458
        %vm528 = vcmp.eq.s32.totalorder %v249, %v462
        %vm529 = vcmp.eq.s32.totalorder %v249, %v466
        %vm530 = vcmp.eq.s32.totalorder %v249, %v470
        %vm531 = vcmp.eq.s32.totalorder %v249, %v474
        %vm532 = vcmp.eq.s32.totalorder %v249, %v478
        %vm533 = vcmp.eq.s32.totalorder %v249, %v482
        %vm534 = vcmp.eq.s32.totalorder %v249, %v486
        %vm535 = vcmp.eq.s32.totalorder %v250, %v458
        %vm536 = vcmp.eq.s32.totalorder %v250, %v462
        %vm537 = vcmp.eq.s32.totalorder %v250, %v466
        %vm538 = vcmp.eq.s32.totalorder %v250, %v470
        %vm539 = vcmp.eq.s32.totalorder %v250, %v474
        %vm540 = vcmp.eq.s32.totalorder %v250, %v478
        %vm541 = vcmp.eq.s32.totalorder %v250, %v482
        %vm542 = vcmp.eq.s32.totalorder %v250, %v486
        %vm543 = vcmp.eq.s32.totalorder %v251, %v458
        %vm544 = vcmp.eq.s32.totalorder %v251, %v462
        %vm545 = vcmp.eq.s32.totalorder %v251, %v466
        %vm546 = vcmp.eq.s32.totalorder %v251, %v470
        %vm547 = vcmp.eq.s32.totalorder %v251, %v474
        %vm548 = vcmp.eq.s32.totalorder %v251, %v478
        %vm549 = vcmp.eq.s32.totalorder %v251, %v482
        %vm550 = vcmp.eq.s32.totalorder %v251, %v486
        %v552 = vlaneseq
        %v553 = vshrl.u32 %v552, 7
        %v554 = vsub.s32 0, %v553
        %v555 = vrot.slane %v241, %v554
        %v556 = vlaneseq
        %v557 = vshrl.u32 %v556, 7
        %v558 = vsub.s32 1, %v557
        %v559 = vrot.slane %v241, %v558
        %v560 = vlaneseq
        %v561 = vshrl.u32 %v560, 7
        %v562 = vsub.s32 2, %v561
        %v563 = vrot.slane %v241, %v562
        %v564 = vlaneseq
        %v565 = vshrl.u32 %v564, 7
        %v566 = vsub.s32 3, %v565
        %v567 = vrot.slane %v241, %v566
        %v568 = vlaneseq
        %v569 = vshrl.u32 %v568, 7
        %v570 = vsub.s32 4, %v569
        %v571 = vrot.slane %v241, %v570
        %v572 = vlaneseq
        %v573 = vshrl.u32 %v572, 7
        %v574 = vsub.s32 5, %v573
        %v575 = vrot.slane %v241, %v574
        %v576 = vlaneseq
        %v577 = vshrl.u32 %v576, 7
        %v578 = vsub.s32 6, %v577
        %v579 = vrot.slane %v241, %v578
        %v580 = vlaneseq
        %v581 = vshrl.u32 %v580, 7
        %v582 = vsub.s32 7, %v581
        %v583 = vrot.slane %v241, %v582
        %v592 = vsel %vm487, %v555, 0.0
        %v593 = vsel %vm488, %v559, 0.0
        %v594 = vsel %vm489, %v563, 0.0
        %v595 = vsel %vm490, %v567, 0.0
        %v596 = vsel %vm491, %v571, 0.0
        %v597 = vsel %vm492, %v575, 0.0
        %v598 = vsel %vm493, %v579, 0.0
        %v599 = vsel %vm494, %v583, 0.0
        %v600 = vsel %vm495, %v555, 0.0
        %v601 = vsel %vm496, %v559, 0.0
        %v602 = vsel %vm497, %v563, 0.0
        %v603 = vsel %vm498, %v567, 0.0
        %v604 = vsel %vm499, %v571, 0.0
        %v605 = vsel %vm500, %v575, 0.0
        %v606 = vsel %vm501, %v579, 0.0
        %v607 = vsel %vm502, %v583, 0.0
        %v608 = vsel %vm503, %v555, 0.0
        %v609 = vsel %vm504, %v559, 0.0
        %v610 = vsel %vm505, %v563, 0.0
        %v611 = vsel %vm506, %v567, 0.0
        %v612 = vsel %vm507, %v571, 0.0
        %v613 = vsel %vm508, %v575, 0.0
        %v614 = vsel %vm509, %v579, 0.0
        %v615 = vsel %vm510, %v583, 0.0
        %v616 = vsel %vm511, %v555, 0.0
        %v617 = vsel %vm512, %v559, 0.0
        %v618 = vsel %vm513, %v563, 0.0
        %v619 = vsel %vm514, %v567, 0.0
        %v620 = vsel %vm515, %v571, 0.0
        %v621 = vsel %vm516, %v575, 0.0
        %v622 = vsel %vm517, %v579, 0.0
        %v623 = vsel %vm518, %v583, 0.0
        %v624 = vsel %vm519, %v555, 0.0
        %v625 = vsel %vm520, %v559, 0.0
        %v626 = vsel %vm521, %v563, 0.0
        %v627 = vsel %vm522, %v567, 0.0
        %v628 = vsel %vm523, %v571, 0.0
        %v629 = vsel %vm524, %v575, 0.0
        %v630 = vsel %vm525, %v579, 0.0
        %v631 = vsel %vm526, %v583, 0.0
        %v632 = vsel %vm527, %v555, 0.0
        %v633 = vsel %vm528, %v559, 0.0
        %v634 = vsel %vm529, %v563, 0.0
        %v635 = vsel %vm530, %v567, 0.0
        %v636 = vsel %vm531, %v571, 0.0
        %v637 = vsel %vm532, %v575, 0.0
        %v638 = vsel %vm533, %v579, 0.0
        %v639 = vsel %vm534, %v583, 0.0
        %v640 = vsel %vm535, %v555, 0.0
        %v641 = vsel %vm536, %v559, 0.0
        %v642 = vsel %vm537, %v563, 0.0
        %v643 = vsel %vm538, %v567, 0.0
        %v644 = vsel %vm539, %v571, 0.0
        %v645 = vsel %vm540, %v575, 0.0
        %v646 = vsel %vm541, %v579, 0.0
        %v647 = vsel %vm542, %v583, 0.0
        %v648 = vsel %vm543, %v555, 0.0
        %v649 = vsel %vm544, %v559, 0.0
        %v650 = vsel %vm545, %v563, 0.0
        %v651 = vsel %vm546, %v567, 0.0
        %v652 = vsel %vm547, %v571, 0.0
        %v653 = vsel %vm548, %v575, 0.0
        %v654 = vsel %vm549, %v579, 0.0
        %v655 = vsel %vm550, %v583, 0.0
        %v656 = vadd.f32 %v390, %v592
        %v657 = vadd.f32 %v391, %v593
        %v658 = vadd.f32 %v392, %v594
        %v659 = vadd.f32 %v393, %v595
        %v660 = vadd.f32 %v394, %v596
        %v661 = vadd.f32 %v395, %v597
        %v662 = vadd.f32 %v396, %v598
        %v663 = vadd.f32 %v397, %v599
        %v664 = vadd.f32 %v398, %v600
        %v665 = vadd.f32 %v399, %v601
        %v666 = vadd.f32 %v400, %v602
        %v667 = vadd.f32 %v401, %v603
        %v668 = vadd.f32 %v402, %v604
        %v669 = vadd.f32 %v403, %v605
        %v670 = vadd.f32 %v404, %v606
        %v671 = vadd.f32 %v405, %v607
        %v672 = vadd.f32 %v406, %v608
        %v673 = vadd.f32 %v407, %v609
        %v674 = vadd.f32 %v408, %v610
        %v675 = vadd.f32 %v409, %v611
        %v676 = vadd.f32 %v410, %v612
        %v677 = vadd.f32 %v411, %v613
        %v678 = vadd.f32 %v412, %v614
        %v679 = vadd.f32 %v413, %v615
        %v680 = vadd.f32 %v414, %v616
        %v681 = vadd.f32 %v415, %v617
        %v682 = vadd.f32 %v416, %v618
        %v683 = vadd.f32 %v417, %v619
        %v684 = vadd.f32 %v418, %v620
        %v685 = vadd.f32 %v419, %v621
        %v686 = vadd.f32 %v420, %v622
        %v687 = vadd.f32 %v421, %v623
        %v688 = vadd.f32 %v422, %v624
        %v689 = vadd.f32 %v423, %v625
        %v690 = vadd.f32 %v424, %v626
        %v691 = vadd.f32 %v425, %v627
        %v692 = vadd.f32 %v426, %v628
        %v693 = vadd.f32 %v427, %v629
        %v694 = vadd.f32 %v428, %v630
        %v695 = vadd.f32 %v429, %v631
        %v696 = vadd.f32 %v430, %v632
        %v697 = vadd.f32 %v431, %v633
        %v698 = vadd.f32 %v432, %v634
        %v699 = vadd.f32 %v433, %v635
        %v700 = vadd.f32 %v434, %v636
        %v701 = vadd.f32 %v435, %v637
        %v702 = vadd.f32 %v436, %v638
        %v703 = vadd.f32 %v437, %v639
        %v704 = vadd.f32 %v438, %v640
        %v705 = vadd.f32 %v439, %v641
        %v706 = vadd.f32 %v440, %v642
        %v707 = vadd.f32 %v441, %v643
        %v708 = vadd.f32 %v442, %v644
        %v709 = vadd.f32 %v443, %v645
        %v710 = vadd.f32 %v444, %v646
        %v711 = vadd.f32 %v445, %v647
        %v712 = vadd.f32 %v446, %v648
        %v713 = vadd.f32 %v447, %v649
        %v714 = vadd.f32 %v448, %v650
        %v715 = vadd.f32 %v449, %v651
        %v716 = vadd.f32 %v450, %v652
        %v717 = vadd.f32 %v451, %v653
        %v718 = vadd.f32 %v452, %v654
        %v719 = vadd.f32 %v453, %v655
        %v720 = vld [vmem:[%s1] sm:$0x3f]
        %vm721 = vcmask 523264
        %v723 = vsel %vm721, %v720, 0
        %725 = vmatprep.subr.mxu0 %v657
        %726 = vmatpush1.msra.mxu0 %v656
        %727 = vmatprep.subr.mxu0 %v665
        %728 = vmatpush1.msra.mxu0 %v664
        %729 = vmatprep.subr.mxu0 %v673
        %730 = vmatpush1.msra.mxu0 %v672
        %731 = vmatprep.subr.mxu0 %v681
        %732 = vmatpush1.msra.mxu0 %v680
        %733 = vmatprep.subr.mxu0 %v689
        %734 = vmatpush1.msra.mxu0 %v688
        %735 = vmatprep.subr.mxu0 %v697
        %736 = vmatpush1.msra.mxu0 %v696
        %737 = vmatprep.subr.mxu0 %v705
        %738 = vmatpush1.msra.mxu0 %v704
        %739 = vmatprep.subr.mxu0 %v713
        %740 = vmatpush1.msra.mxu0 %v712
        %741 = vmatprep.subr.mxu0 0.0
        %742 = vmatpush1.msra.mxu0 0.0
        %743 = vmatprep.subr.mxu0 0.0
        %744 = vmatpush1.msra.mxu0 0.0
        %745 = vmatprep.subr.mxu0 0.0
        %746 = vmatpush1.msra.mxu0 0.0
        %747 = vmatprep.subr.mxu0 0.0
        %748 = vmatpush1.msra.mxu0 0.0
        %749 = vmatprep.subr.mxu0 0.0
        %750 = vmatpush1.msra.mxu0 0.0
        %751 = vmatprep.subr.mxu0 0.0
        %752 = vmatpush1.msra.mxu0 0.0
        %753 = vmatprep.subr.mxu0 0.0
        %754 = vmatpush1.msra.mxu0 0.0
        %755 = vmatprep.subr.mxu0 0.0
        %756 = vmatpush1.msra.mxu0 0.0
        %757 = vmatprep.subr.mxu0 0.0
        %758 = vmatpush1.msra.mxu0 0.0
        %759 = vmatprep.subr.mxu0 0.0
        %760 = vmatpush1.msra.mxu0 0.0
        %761 = vmatprep.subr.mxu0 0.0
        %762 = vmatpush1.msra.mxu0 0.0
        %763 = vmatprep.subr.mxu0 0.0
        %764 = vmatpush1.msra.mxu0 0.0
        %765 = vmatprep.subr.mxu0 0.0
        %766 = vmatpush1.msra.mxu0 0.0
        %767 = vmatprep.subr.mxu0 0.0
        %768 = vmatpush1.msra.mxu0 0.0
        %769 = vmatprep.subr.mxu0 0.0
        %770 = vmatpush1.msra.mxu0 0.0
        %771 = vmatprep.subr.mxu0 0.0
        %772 = vmatpush1.msra.mxu0 0.0
        %773 = vmatprep.subr.mxu0 0.0
        %774 = vmatpush1.msra.mxu0 0.0
        %775 = vmatprep.subr.mxu0 0.0
        %776 = vmatpush1.msra.mxu0 0.0
        %777 = vmatprep.subr.mxu0 0.0
        %778 = vmatpush1.msra.mxu0 0.0
        %779 = vmatprep.subr.mxu0 0.0
        %780 = vmatpush1.msra.mxu0 0.0
        %781 = vmatprep.subr.mxu0 0.0
        %782 = vmatpush1.msra.mxu0 0.0
        %783 = vmatprep.subr.mxu0 0.0
        %784 = vmatpush1.msra.mxu0 0.0
        %785 = vmatprep.subr.mxu0 0.0
        %786 = vmatpush1.msra.mxu0 0.0
        %787 = vmatprep.subr.mxu0 0.0
        %788 = vmatpush1.msra.mxu0 0.0
        %789 = vmatprep.mubr.f32.mxu0 0.0
        %790 = vmatmul.mubr.f32.gmra.mrb[0].mxu0 %v723
        %v791 = vpop.f32.mrb[0].mxu0
        %v792 = vadd.f32 0.0, %v791
        %v793 = vpop.f32.mrb[0].mxu0
        %v794 = vadd.f32 0.0, %v793
        %795 = vdwg.mxu0
        %796 = vmatprep.subr.mxu0 %v659
        %797 = vmatpush1.msra.mxu0 %v658
        %798 = vmatprep.subr.mxu0 %v667
        %799 = vmatpush1.msra.mxu0 %v666
        %800 = vmatprep.subr.mxu0 %v675
        %801 = vmatpush1.msra.mxu0 %v674
        %802 = vmatprep.subr.mxu0 %v683
        %803 = vmatpush1.msra.mxu0 %v682
        %804 = vmatprep.subr.mxu0 %v691
        %805 = vmatpush1.msra.mxu0 %v690
        %806 = vmatprep.subr.mxu0 %v699
        %807 = vmatpush1.msra.mxu0 %v698
        %808 = vmatprep.subr.mxu0 %v707
        %809 = vmatpush1.msra.mxu0 %v706
        %810 = vmatprep.subr.mxu0 %v715
        %811 = vmatpush1.msra.mxu0 %v714
        %812 = vmatprep.subr.mxu0 0.0
        %813 = vmatpush1.msra.mxu0 0.0
        %814 = vmatprep.subr.mxu0 0.0
        %815 = vmatpush1.msra.mxu0 0.0
        %816 = vmatprep.subr.mxu0 0.0
        %817 = vmatpush1.msra.mxu0 0.0
        %818 = vmatprep.subr.mxu0 0.0
        %819 = vmatpush1.msra.mxu0 0.0
        %820 = vmatprep.subr.mxu0 0.0
        %821 = vmatpush1.msra.mxu0 0.0
        %822 = vmatprep.subr.mxu0 0.0
        %823 = vmatpush1.msra.mxu0 0.0
        %824 = vmatprep.subr.mxu0 0.0
        %825 = vmatpush1.msra.mxu0 0.0
        %826 = vmatprep.subr.mxu0 0.0
        %827 = vmatpush1.msra.mxu0 0.0
        %828 = vmatprep.subr.mxu0 0.0
        %829 = vmatpush1.msra.mxu0 0.0
        %830 = vmatprep.subr.mxu0 0.0
        %831 = vmatpush1.msra.mxu0 0.0
        %832 = vmatprep.subr.mxu0 0.0
        %833 = vmatpush1.msra.mxu0 0.0
        %834 = vmatprep.subr.mxu0 0.0
        %835 = vmatpush1.msra.mxu0 0.0
        %836 = vmatprep.subr.mxu0 0.0
        %837 = vmatpush1.msra.mxu0 0.0
        %838 = vmatprep.subr.mxu0 0.0
        %839 = vmatpush1.msra.mxu0 0.0
        %840 = vmatprep.subr.mxu0 0.0
        %841 = vmatpush1.msra.mxu0 0.0
        %842 = vmatprep.subr.mxu0 0.0
        %843 = vmatpush1.msra.mxu0 0.0
        %844 = vmatprep.subr.mxu0 0.0
        %845 = vmatpush1.msra.mxu0 0.0
        %846 = vmatprep.subr.mxu0 0.0
        %847 = vmatpush1.msra.mxu0 0.0
        %848 = vmatprep.subr.mxu0 0.0
        %849 = vmatpush1.msra.mxu0 0.0
        %850 = vmatprep.subr.mxu0 0.0
        %851 = vmatpush1.msra.mxu0 0.0
        %852 = vmatprep.subr.mxu0 0.0
        %853 = vmatpush1.msra.mxu0 0.0
        %854 = vmatprep.subr.mxu0 0.0
        %855 = vmatpush1.msra.mxu0 0.0
        %856 = vmatprep.subr.mxu0 0.0
        %857 = vmatpush1.msra.mxu0 0.0
        %858 = vmatprep.subr.mxu0 0.0
        %859 = vmatpush1.msra.mxu0 0.0
        %860 = vmatprep.mubr.f32.mxu0 0.0
        %861 = vmatmul.mubr.f32.gmra.mrb[0].mxu0 %v723
        %v862 = vpop.f32.mrb[0].mxu0
        %v863 = vadd.f32 0.0, %v862
        %v864 = vpop.f32.mrb[0].mxu0
        %v865 = vadd.f32 0.0, %v864
        %866 = vdwg.mxu0
        %867 = vmatprep.subr.mxu0 %v661
        %868 = vmatpush1.msra.mxu0 %v660
        %869 = vmatprep.subr.mxu0 %v669
        %870 = vmatpush1.msra.mxu0 %v668
        %871 = vmatprep.subr.mxu0 %v677
        %872 = vmatpush1.msra.mxu0 %v676
        %873 = vmatprep.subr.mxu0 %v685
        %874 = vmatpush1.msra.mxu0 %v684
        %875 = vmatprep.subr.mxu0 %v693
        %876 = vmatpush1.msra.mxu0 %v692
        %877 = vmatprep.subr.mxu0 %v701
        %878 = vmatpush1.msra.mxu0 %v700
        %879 = vmatprep.subr.mxu0 %v709
        %880 = vmatpush1.msra.mxu0 %v708
        %881 = vmatprep.subr.mxu0 %v717
        %882 = vmatpush1.msra.mxu0 %v716
        %883 = vmatprep.subr.mxu0 0.0
        %884 = vmatpush1.msra.mxu0 0.0
        %885 = vmatprep.subr.mxu0 0.0
        %886 = vmatpush1.msra.mxu0 0.0
        %887 = vmatprep.subr.mxu0 0.0
        %888 = vmatpush1.msra.mxu0 0.0
        %889 = vmatprep.subr.mxu0 0.0
        %890 = vmatpush1.msra.mxu0 0.0
        %891 = vmatprep.subr.mxu0 0.0
        %892 = vmatpush1.msra.mxu0 0.0
        %893 = vmatprep.subr.mxu0 0.0
        %894 = vmatpush1.msra.mxu0 0.0
        %895 = vmatprep.subr.mxu0 0.0
        %896 = vmatpush1.msra.mxu0 0.0
        %897 = vmatprep.subr.mxu0 0.0
        %898 = vmatpush1.msra.mxu0 0.0
        %899 = vmatprep.subr.mxu0 0.0
        %900 = vmatpush1.msra.mxu0 0.0
        %901 = vmatprep.subr.mxu0 0.0
        %902 = vmatpush1.msra.mxu0 0.0
        %903 = vmatprep.subr.mxu0 0.0
        %904 = vmatpush1.msra.mxu0 0.0
        %905 = vmatprep.subr.mxu0 0.0
        %906 = vmatpush1.msra.mxu0 0.0
        %907 = vmatprep.subr.mxu0 0.0
        %908 = vmatpush1.msra.mxu0 0.0
        %909 = vmatprep.subr.mxu0 0.0
        %910 = vmatpush1.msra.mxu0 0.0
        %911 = vmatprep.subr.mxu0 0.0
        %912 = vmatpush1.msra.mxu0 0.0
        %913 = vmatprep.subr.mxu0 0.0
        %914 = vmatpush1.msra.mxu0 0.0
        %915 = vmatprep.subr.mxu0 0.0
        %916 = vmatpush1.msra.mxu0 0.0
        %917 = vmatprep.subr.mxu0 0.0
        %918 = vmatpush1.msra.mxu0 0.0
        %919 = vmatprep.subr.mxu0 0.0
        %920 = vmatpush1.msra.mxu0 0.0
        %921 = vmatprep.subr.mxu0 0.0
        %922 = vmatpush1.msra.mxu0 0.0
        %923 = vmatprep.subr.mxu0 0.0
        %924 = vmatpush1.msra.mxu0 0.0
        %925 = vmatprep.subr.mxu0 0.0
        %926 = vmatpush1.msra.mxu0 0.0
        %927 = vmatprep.subr.mxu0 0.0
        %928 = vmatpush1.msra.mxu0 0.0
        %929 = vmatprep.subr.mxu0 0.0
        %930 = vmatpush1.msra.mxu0 0.0
        %931 = vmatprep.mubr.f32.mxu0 0.0
        %932 = vmatmul.mubr.f32.gmra.mrb[0].mxu0 %v723
        %v933 = vpop.f32.mrb[0].mxu0
        %v934 = vadd.f32 0.0, %v933
        %v935 = vpop.f32.mrb[0].mxu0
        %v936 = vadd.f32 0.0, %v935
        %937 = vdwg.mxu0
        %938 = vmatprep.subr.mxu0 %v663
        %939 = vmatpush1.msra.mxu0 %v662
        %940 = vmatprep.subr.mxu0 %v671
        %941 = vmatpush1.msra.mxu0 %v670
        %942 = vmatprep.subr.mxu0 %v679
        %943 = vmatpush1.msra.mxu0 %v678
        %944 = vmatprep.subr.mxu0 %v687
        %945 = vmatpush1.msra.mxu0 %v686
        %946 = vmatprep.subr.mxu0 %v695
        %947 = vmatpush1.msra.mxu0 %v694
        %948 = vmatprep.subr.mxu0 %v703
        %949 = vmatpush1.msra.mxu0 %v702
        %950 = vmatprep.subr.mxu0 %v711
        %951 = vmatpush1.msra.mxu0 %v710
        %952 = vmatprep.subr.mxu0 %v719
        %953 = vmatpush1.msra.mxu0 %v718
        %954 = vmatprep.subr.mxu0 0.0
        %955 = vmatpush1.msra.mxu0 0.0
        %956 = vmatprep.subr.mxu0 0.0
        %957 = vmatpush1.msra.mxu0 0.0
        %958 = vmatprep.subr.mxu0 0.0
        %959 = vmatpush1.msra.mxu0 0.0
        %960 = vmatprep.subr.mxu0 0.0
        %961 = vmatpush1.msra.mxu0 0.0
        %962 = vmatprep.subr.mxu0 0.0
        %963 = vmatpush1.msra.mxu0 0.0
        %964 = vmatprep.subr.mxu0 0.0
        %965 = vmatpush1.msra.mxu0 0.0
        %966 = vmatprep.subr.mxu0 0.0
        %967 = vmatpush1.msra.mxu0 0.0
        %968 = vmatprep.subr.mxu0 0.0
        %969 = vmatpush1.msra.mxu0 0.0
        %970 = vmatprep.subr.mxu0 0.0
        %971 = vmatpush1.msra.mxu0 0.0
        %972 = vmatprep.subr.mxu0 0.0
        %973 = vmatpush1.msra.mxu0 0.0
        %974 = vmatprep.subr.mxu0 0.0
        %975 = vmatpush1.msra.mxu0 0.0
        %976 = vmatprep.subr.mxu0 0.0
        %977 = vmatpush1.msra.mxu0 0.0
        %978 = vmatprep.subr.mxu0 0.0
        %979 = vmatpush1.msra.mxu0 0.0
        %980 = vmatprep.subr.mxu0 0.0
        %981 = vmatpush1.msra.mxu0 0.0
        %982 = vmatprep.subr.mxu0 0.0
        %983 = vmatpush1.msra.mxu0 0.0
        %984 = vmatprep.subr.mxu0 0.0
        %985 = vmatpush1.msra.mxu0 0.0
        %986 = vmatprep.subr.mxu0 0.0
        %987 = vmatpush1.msra.mxu0 0.0
        %988 = vmatprep.subr.mxu0 0.0
        %989 = vmatpush1.msra.mxu0 0.0
        %990 = vmatprep.subr.mxu0 0.0
        %991 = vmatpush1.msra.mxu0 0.0
        %992 = vmatprep.subr.mxu0 0.0
        %993 = vmatpush1.msra.mxu0 0.0
        %994 = vmatprep.subr.mxu0 0.0
        %995 = vmatpush1.msra.mxu0 0.0
        %996 = vmatprep.subr.mxu0 0.0
        %997 = vmatpush1.msra.mxu0 0.0
        %998 = vmatprep.subr.mxu0 0.0
        %999 = vmatpush1.msra.mxu0 0.0
        %1000 = vmatprep.subr.mxu0 0.0
        %1001 = vmatpush1.msra.mxu0 0.0
        %1002 = vmatprep.mubr.f32.mxu0 0.0
        %1003 = vmatmul.mubr.f32.gmra.mrb[0].mxu0 %v723
        %v1004 = vpop.f32.mrb[0].mxu0
        %v1005 = vadd.f32 0.0, %v1004
        %v1006 = vpop.f32.mrb[0].mxu0
        %v1007 = vadd.f32 0.0, %v1006
        %1008 = vdwg.mxu0
        %v1009 = vld [vmem:[%s2] sm:$0xff]
        %v1010 = vld [vmem:[%s2 + $0x8] sm:$0xff]
        %v1011 = vld [vmem:[%s2 + $0x10] sm:$0xff]
        %v1012 = vld [vmem:[%s2 + $0x18] sm:$0xff]
        %1014 = vset.pattern.permute.xlu0 0
        %1015 = vperm.xlu0 %1014, %v1009
        %v1016 = vpop.permute.xlu0 %1015
        %1019 = vset.pattern.permute.xlu0 0
        %1020 = vperm.xlu0 %1019, %v1010
        %v1021 = vpop.permute.xlu0 %1020
        %1024 = vset.pattern.permute.xlu0 0
        %1025 = vperm.xlu0 %1024, %v1011
        %v1026 = vpop.permute.xlu0 %1025
        %1029 = vset.pattern.permute.xlu0 0
        %1030 = vperm.xlu0 %1029, %v1012
        %v1031 = vpop.permute.xlu0 %1030
        %v1034 = vlaneseq
        %v1035 = vshrl.u32 %v1034, 7
        %v1036 = vsub.s32 0, %v1035
        %v1037 = vrot.slane %v238, %v1036
        %v1038 = vlaneseq
        %v1039 = vshrl.u32 %v1038, 7
        %v1040 = vsub.s32 1, %v1039
        %v1041 = vrot.slane %v238, %v1040
        %v1042 = vlaneseq
        %v1043 = vshrl.u32 %v1042, 7
        %v1044 = vsub.s32 2, %v1043
        %v1045 = vrot.slane %v238, %v1044
        %v1046 = vlaneseq
        %v1047 = vshrl.u32 %v1046, 7
        %v1048 = vsub.s32 3, %v1047
        %v1049 = vrot.slane %v238, %v1048
        %v1050 = vlaneseq
        %v1051 = vshrl.u32 %v1050, 7
        %v1052 = vsub.s32 4, %v1051
        %v1053 = vrot.slane %v238, %v1052
        %v1054 = vlaneseq
        %v1055 = vshrl.u32 %v1054, 7
        %v1056 = vsub.s32 5, %v1055
        %v1057 = vrot.slane %v238, %v1056
        %v1058 = vlaneseq
        %v1059 = vshrl.u32 %v1058, 7
        %v1060 = vsub.s32 6, %v1059
        %v1061 = vrot.slane %v238, %v1060
        %v1062 = vlaneseq
        %v1063 = vshrl.u32 %v1062, 7
        %v1064 = vsub.s32 7, %v1063
        %v1065 = vrot.slane %v238, %v1064
        %v1074 = vmul.f32 %v1016, %v1037
        %v1075 = vmul.f32 %v1016, %v1041
        %v1076 = vmul.f32 %v1016, %v1045
        %v1077 = vmul.f32 %v1016, %v1049
        %v1078 = vmul.f32 %v1016, %v1053
        %v1079 = vmul.f32 %v1016, %v1057
        %v1080 = vmul.f32 %v1016, %v1061
        %v1081 = vmul.f32 %v1016, %v1065
        %v1082 = vmul.f32 %v1021, %v1037
        %v1083 = vmul.f32 %v1021, %v1041
        %v1084 = vmul.f32 %v1021, %v1045
        %v1085 = vmul.f32 %v1021, %v1049
        %v1086 = vmul.f32 %v1021, %v1053
        %v1087 = vmul.f32 %v1021, %v1057
        %v1088 = vmul.f32 %v1021, %v1061
        %v1089 = vmul.f32 %v1021, %v1065
        %v1090 = vmul.f32 %v1026, %v1037
        %v1091 = vmul.f32 %v1026, %v1041
        %v1092 = vmul.f32 %v1026, %v1045
        %v1093 = vmul.f32 %v1026, %v1049
        %v1094 = vmul.f32 %v1026, %v1053
        %v1095 = vmul.f32 %v1026, %v1057
        %v1096 = vmul.f32 %v1026, %v1061
        %v1097 = vmul.f32 %v1026, %v1065
        %v1098 = vmul.f32 %v1031, %v1037
        %v1099 = vmul.f32 %v1031, %v1041
        %v1100 = vmul.f32 %v1031, %v1045
        %v1101 = vmul.f32 %v1031, %v1049
        %v1102 = vmul.f32 %v1031, %v1053
        %v1103 = vmul.f32 %v1031, %v1057
        %v1104 = vmul.f32 %v1031, %v1061
        %v1105 = vmul.f32 %v1031, %v1065
        %1106 = vset.pattern.permute.xlu0 1
        %1107 = vperm.xlu0 %1106, %v1009
        %v1108 = vpop.permute.xlu0 %1107
        %1110 = vset.pattern.permute.xlu0 1
        %1111 = vperm.xlu0 %1110, %v1010
        %v1112 = vpop.permute.xlu0 %1111
        %1114 = vset.pattern.permute.xlu0 1
        %1115 = vperm.xlu0 %1114, %v1011
        %v1116 = vpop.permute.xlu0 %1115
        %1118 = vset.pattern.permute.xlu0 1
        %1119 = vperm.xlu0 %1118, %v1012
        %v1120 = vpop.permute.xlu0 %1119
        %v1122 = vadd.f32 %v1074, %v1108
        %v1123 = vadd.f32 %v1075, %v1108
        %v1124 = vadd.f32 %v1076, %v1108
        %v1125 = vadd.f32 %v1077, %v1108
        %v1126 = vadd.f32 %v1078, %v1108
        %v1127 = vadd.f32 %v1079, %v1108
        %v1128 = vadd.f32 %v1080, %v1108
        %v1129 = vadd.f32 %v1081, %v1108
        %v1130 = vadd.f32 %v1082, %v1112
        %v1131 = vadd.f32 %v1083, %v1112
        %v1132 = vadd.f32 %v1084, %v1112
        %v1133 = vadd.f32 %v1085, %v1112
        %v1134 = vadd.f32 %v1086, %v1112
        %v1135 = vadd.f32 %v1087, %v1112
        %v1136 = vadd.f32 %v1088, %v1112
        %v1137 = vadd.f32 %v1089, %v1112
        %v1138 = vadd.f32 %v1090, %v1116
        %v1139 = vadd.f32 %v1091, %v1116
        %v1140 = vadd.f32 %v1092, %v1116
        %v1141 = vadd.f32 %v1093, %v1116
        %v1142 = vadd.f32 %v1094, %v1116
        %v1143 = vadd.f32 %v1095, %v1116
        %v1144 = vadd.f32 %v1096, %v1116
        %v1145 = vadd.f32 %v1097, %v1116
        %v1146 = vadd.f32 %v1098, %v1120
        %v1147 = vadd.f32 %v1099, %v1120
        %v1148 = vadd.f32 %v1100, %v1120
        %v1149 = vadd.f32 %v1101, %v1120
        %v1150 = vadd.f32 %v1102, %v1120
        %v1151 = vadd.f32 %v1103, %v1120
        %v1152 = vadd.f32 %v1104, %v1120
        %v1153 = vadd.f32 %v1105, %v1120
        %v1154 = vlaneseq
        %v1155 = vshrl.u32 %v1154, 7
        %v1156 = vsub.s32 0, %v1155
        %v1157 = vrot.slane %v792, %v1156
        %v1158 = vlaneseq
        %v1159 = vshrl.u32 %v1158, 7
        %v1160 = vsub.s32 0, %v1159
        %v1161 = vrot.slane %v794, %v1160
        %v1162 = vlaneseq
        %v1163 = vshrl.u32 %v1162, 7
        %v1164 = vsub.s32 0, %v1163
        %v1165 = vrot.slane %v863, %v1164
        %v1166 = vlaneseq
        %v1167 = vshrl.u32 %v1166, 7
        %v1168 = vsub.s32 0, %v1167
        %v1169 = vrot.slane %v865, %v1168
        %v1170 = vlaneseq
        %v1171 = vshrl.u32 %v1170, 7
        %v1172 = vsub.s32 0, %v1171
        %v1173 = vrot.slane %v934, %v1172
        %v1174 = vlaneseq
        %v1175 = vshrl.u32 %v1174, 7
        %v1176 = vsub.s32 0, %v1175
        %v1177 = vrot.slane %v936, %v1176
        %v1178 = vlaneseq
        %v1179 = vshrl.u32 %v1178, 7
        %v1180 = vsub.s32 0, %v1179
        %v1181 = vrot.slane %v1005, %v1180
        %v1182 = vlaneseq
        %v1183 = vshrl.u32 %v1182, 7
        %v1184 = vsub.s32 0, %v1183
        %v1185 = vrot.slane %v1007, %v1184
        %v1186 = vmul.f32 %v1157, %v1122
        %v1187 = vmul.f32 %v1161, %v1123
        %v1188 = vmul.f32 %v1165, %v1124
        %v1189 = vmul.f32 %v1169, %v1125
        %v1190 = vmul.f32 %v1173, %v1126
        %v1191 = vmul.f32 %v1177, %v1127
        %v1192 = vmul.f32 %v1181, %v1128
        %v1193 = vmul.f32 %v1185, %v1129
        %v1194 = vmul.f32 %v1157, %v1130
        %v1195 = vmul.f32 %v1161, %v1131
        %v1196 = vmul.f32 %v1165, %v1132
        %v1197 = vmul.f32 %v1169, %v1133
        %v1198 = vmul.f32 %v1173, %v1134
        %v1199 = vmul.f32 %v1177, %v1135
        %v1200 = vmul.f32 %v1181, %v1136
        %v1201 = vmul.f32 %v1185, %v1137
        %v1202 = vmul.f32 %v1157, %v1138
        %v1203 = vmul.f32 %v1161, %v1139
        %v1204 = vmul.f32 %v1165, %v1140
        %v1205 = vmul.f32 %v1169, %v1141
        %v1206 = vmul.f32 %v1173, %v1142
        %v1207 = vmul.f32 %v1177, %v1143
        %v1208 = vmul.f32 %v1181, %v1144
        %v1209 = vmul.f32 %v1185, %v1145
        %v1210 = vmul.f32 %v1157, %v1146
        %v1211 = vmul.f32 %v1161, %v1147
        %v1212 = vmul.f32 %v1165, %v1148
        %v1213 = vmul.f32 %v1169, %v1149
        %v1214 = vmul.f32 %v1173, %v1150
        %v1215 = vmul.f32 %v1177, %v1151
        %v1216 = vmul.f32 %v1181, %v1152
        %v1217 = vmul.f32 %v1185, %v1153
        %v1218 = vlaneseq
        %v1219 = vshrl.u32 %v1218, 7
        %v1220 = vsub.s32 1, %v1219
        %v1221 = vrot.slane %v792, %v1220
        %v1222 = vlaneseq
        %v1223 = vshrl.u32 %v1222, 7
        %v1224 = vsub.s32 1, %v1223
        %v1225 = vrot.slane %v794, %v1224
        %v1226 = vlaneseq
        %v1227 = vshrl.u32 %v1226, 7
        %v1228 = vsub.s32 1, %v1227
        %v1229 = vrot.slane %v863, %v1228
        %v1230 = vlaneseq
        %v1231 = vshrl.u32 %v1230, 7
        %v1232 = vsub.s32 1, %v1231
        %v1233 = vrot.slane %v865, %v1232
        %v1234 = vlaneseq
        %v1235 = vshrl.u32 %v1234, 7
        %v1236 = vsub.s32 1, %v1235
        %v1237 = vrot.slane %v934, %v1236
        %v1238 = vlaneseq
        %v1239 = vshrl.u32 %v1238, 7
        %v1240 = vsub.s32 1, %v1239
        %v1241 = vrot.slane %v936, %v1240
        %v1242 = vlaneseq
        %v1243 = vshrl.u32 %v1242, 7
        %v1244 = vsub.s32 1, %v1243
        %v1245 = vrot.slane %v1005, %v1244
        %v1246 = vlaneseq
        %v1247 = vshrl.u32 %v1246, 7
        %v1248 = vsub.s32 1, %v1247
        %v1249 = vrot.slane %v1007, %v1248
        %v1250 = vadd.f32 %v1186, %v1221
        %v1251 = vadd.f32 %v1187, %v1225
        %v1252 = vadd.f32 %v1188, %v1229
        %v1253 = vadd.f32 %v1189, %v1233
        %v1254 = vadd.f32 %v1190, %v1237
        %v1255 = vadd.f32 %v1191, %v1241
        %v1256 = vadd.f32 %v1192, %v1245
        %v1257 = vadd.f32 %v1193, %v1249
        %v1258 = vadd.f32 %v1194, %v1221
        %v1259 = vadd.f32 %v1195, %v1225
        %v1260 = vadd.f32 %v1196, %v1229
        %v1261 = vadd.f32 %v1197, %v1233
        %v1262 = vadd.f32 %v1198, %v1237
        %v1263 = vadd.f32 %v1199, %v1241
        %v1264 = vadd.f32 %v1200, %v1245
        %v1265 = vadd.f32 %v1201, %v1249
        %v1266 = vadd.f32 %v1202, %v1221
        %v1267 = vadd.f32 %v1203, %v1225
        %v1268 = vadd.f32 %v1204, %v1229
        %v1269 = vadd.f32 %v1205, %v1233
        %v1270 = vadd.f32 %v1206, %v1237
        %v1271 = vadd.f32 %v1207, %v1241
        %v1272 = vadd.f32 %v1208, %v1245
        %v1273 = vadd.f32 %v1209, %v1249
        %v1274 = vadd.f32 %v1210, %v1221
        %v1275 = vadd.f32 %v1211, %v1225
        %v1276 = vadd.f32 %v1212, %v1229
        %v1277 = vadd.f32 %v1213, %v1233
        %v1278 = vadd.f32 %v1214, %v1237
        %v1279 = vadd.f32 %v1215, %v1241
        %v1280 = vadd.f32 %v1216, %v1245
        %v1281 = vadd.f32 %v1217, %v1249
        %v1282 = vld [vmem:[#allocation2] sm:$0xff]
        %v1283 = vld [vmem:[#allocation2 + $0x8] sm:$0xff]
        %v1284 = vld [vmem:[#allocation2 + $0x10] sm:$0xff]
        %v1285 = vld [vmem:[#allocation2 + $0x18] sm:$0xff]
        %1286 = vset.pattern.permute.xlu0 2
        %1287 = vperm.xlu0 %1286, %v1009
        %v1288 = vpop.permute.xlu0 %1287
        %1290 = vset.pattern.permute.xlu0 2
        %1291 = vperm.xlu0 %1290, %v1010
        %v1292 = vpop.permute.xlu0 %1291
        %1294 = vset.pattern.permute.xlu0 2
        %1295 = vperm.xlu0 %1294, %v1011
        %v1296 = vpop.permute.xlu0 %1295
        %1298 = vset.pattern.permute.xlu0 2
        %1299 = vperm.xlu0 %1298, %v1012
        %v1300 = vpop.permute.xlu0 %1299
        %vm1302 = vcmask 261120
        %v1304 = vsel %vm1302, %v1282, 0
        %v1307 = vsel %vm1302, %v1283, 0
        %v1310 = vsel %vm1302, %v1284, 0
        %v1313 = vsel %vm1302, %v1285, 0
        %1315 = vmatprep.subr.mxu0 %v1251
        %1316 = vmatpush1.msra.mxu0 %v1250
        %1317 = vmatprep.subr.mxu0 %v1259
        %1318 = vmatpush1.msra.mxu0 %v1258
        %1319 = vmatprep.subr.mxu0 %v1267
        %1320 = vmatpush1.msra.mxu0 %v1266
        %1321 = vmatprep.subr.mxu0 %v1275
        %1322 = vmatpush1.msra.mxu0 %v1274
        %1323 = vmatprep.subr.mxu0 0.0
        %1324 = vmatpush1.msra.mxu0 0.0
        %1325 = vmatprep.subr.mxu0 0.0
        %1326 = vmatpush1.msra.mxu0 0.0
        %1327 = vmatprep.subr.mxu0 0.0
        %1328 = vmatpush1.msra.mxu0 0.0
        %1329 = vmatprep.subr.mxu0 0.0
        %1330 = vmatpush1.msra.mxu0 0.0
        %1331 = vmatprep.subr.mxu0 0.0
        %1332 = vmatpush1.msra.mxu0 0.0
        %1333 = vmatprep.subr.mxu0 0.0
        %1334 = vmatpush1.msra.mxu0 0.0
        %1335 = vmatprep.subr.mxu0 0.0
        %1336 = vmatpush1.msra.mxu0 0.0
        %1337 = vmatprep.subr.mxu0 0.0
        %1338 = vmatpush1.msra.mxu0 0.0
        %1339 = vmatprep.subr.mxu0 0.0
        %1340 = vmatpush1.msra.mxu0 0.0
        %1341 = vmatprep.subr.mxu0 0.0
        %1342 = vmatpush1.msra.mxu0 0.0
        %1343 = vmatprep.subr.mxu0 0.0
        %1344 = vmatpush1.msra.mxu0 0.0
        %1345 = vmatprep.subr.mxu0 0.0
        %1346 = vmatpush1.msra.mxu0 0.0
        %1347 = vmatprep.subr.mxu0 0.0
        %1348 = vmatpush1.msra.mxu0 0.0
        %1349 = vmatprep.subr.mxu0 0.0
        %1350 = vmatpush1.msra.mxu0 0.0
        %1351 = vmatprep.subr.mxu0 0.0
        %1352 = vmatpush1.msra.mxu0 0.0
        %1353 = vmatprep.subr.mxu0 0.0
        %1354 = vmatpush1.msra.mxu0 0.0
        %1355 = vmatprep.subr.mxu0 0.0
        %1356 = vmatpush1.msra.mxu0 0.0
        %1357 = vmatprep.subr.mxu0 0.0
        %1358 = vmatpush1.msra.mxu0 0.0
        %1359 = vmatprep.subr.mxu0 0.0
        %1360 = vmatpush1.msra.mxu0 0.0
        %1361 = vmatprep.subr.mxu0 0.0
        %1362 = vmatpush1.msra.mxu0 0.0
        %1363 = vmatprep.subr.mxu0 0.0
        %1364 = vmatpush1.msra.mxu0 0.0
        %1365 = vmatprep.subr.mxu0 0.0
        %1366 = vmatpush1.msra.mxu0 0.0
        %1367 = vmatprep.subr.mxu0 0.0
        %1368 = vmatpush1.msra.mxu0 0.0
        %1369 = vmatprep.subr.mxu0 0.0
        %1370 = vmatpush1.msra.mxu0 0.0
        %1371 = vmatprep.subr.mxu0 0.0
        %1372 = vmatpush1.msra.mxu0 0.0
        %1373 = vmatprep.subr.mxu0 0.0
        %1374 = vmatpush1.msra.mxu0 0.0
        %1375 = vmatprep.subr.mxu0 0.0
        %1376 = vmatpush1.msra.mxu0 0.0
        %1377 = vmatprep.subr.mxu0 0.0
        %1378 = vmatpush1.msra.mxu0 0.0
        %1379 = vmatprep.mubr.f32.mxu0 0.0
        %1380 = vmatmul.mubr.f32.gmra.mrb[0].mxu0 %v1304
        %v1381 = vpop.f32.mrb[0].mxu0
        %v1382 = vadd.f32 %v1288, %v1381
        %v1383 = vpop.f32.mrb[0].mxu0
        %v1384 = vadd.f32 %v1288, %v1383
        %1385 = vmatprep.mubr.f32.mxu0 0.0
        %1386 = vmatmul.mubr.f32.gmra.mrb[0].mxu0 %v1307
        %v1387 = vpop.f32.mrb[0].mxu0
        %v1388 = vadd.f32 %v1292, %v1387
        %v1389 = vpop.f32.mrb[0].mxu0
        %v1390 = vadd.f32 %v1292, %v1389
        %1391 = vmatprep.mubr.f32.mxu0 0.0
        %1392 = vmatmul.mubr.f32.gmra.mrb[0].mxu0 %v1310
        %v1393 = vpop.f32.mrb[0].mxu0
        %v1394 = vadd.f32 %v1296, %v1393
        %v1395 = vpop.f32.mrb[0].mxu0
        %v1396 = vadd.f32 %v1296, %v1395
        %1397 = vmatprep.mubr.f32.mxu0 0.0
        %1398 = vmatmul.mubr.f32.gmra.mrb[0].mxu0 %v1313
        %v1399 = vpop.f32.mrb[0].mxu0
        %v1400 = vadd.f32 %v1300, %v1399
        %v1401 = vpop.f32.mrb[0].mxu0
        %v1402 = vadd.f32 %v1300, %v1401
        %1403 = vdwg.mxu0
        %1404 = vmatprep.subr.mxu0 %v1253
        %1405 = vmatpush1.msra.mxu0 %v1252
        %1406 = vmatprep.subr.mxu0 %v1261
        %1407 = vmatpush1.msra.mxu0 %v1260
        %1408 = vmatprep.subr.mxu0 %v1269
        %1409 = vmatpush1.msra.mxu0 %v1268
        %1410 = vmatprep.subr.mxu0 %v1277
        %1411 = vmatpush1.msra.mxu0 %v1276
        %1412 = vmatprep.subr.mxu0 0.0
        %1413 = vmatpush1.msra.mxu0 0.0
        %1414 = vmatprep.subr.mxu0 0.0
        %1415 = vmatpush1.msra.mxu0 0.0
        %1416 = vmatprep.subr.mxu0 0.0
        %1417 = vmatpush1.msra.mxu0 0.0
        %1418 = vmatprep.subr.mxu0 0.0
        %1419 = vmatpush1.msra.mxu0 0.0
        %1420 = vmatprep.subr.mxu0 0.0
        %1421 = vmatpush1.msra.mxu0 0.0
        %1422 = vmatprep.subr.mxu0 0.0
        %1423 = vmatpush1.msra.mxu0 0.0
        %1424 = vmatprep.subr.mxu0 0.0
        %1425 = vmatpush1.msra.mxu0 0.0
        %1426 = vmatprep.subr.mxu0 0.0
        %1427 = vmatpush1.msra.mxu0 0.0
        %1428 = vmatprep.subr.mxu0 0.0
        %1429 = vmatpush1.msra.mxu0 0.0
        %1430 = vmatprep.subr.mxu0 0.0
        %1431 = vmatpush1.msra.mxu0 0.0
        %1432 = vmatprep.subr.mxu0 0.0
        %1433 = vmatpush1.msra.mxu0 0.0
        %1434 = vmatprep.subr.mxu0 0.0
        %1435 = vmatpush1.msra.mxu0 0.0
        %1436 = vmatprep.subr.mxu0 0.0
        %1437 = vmatpush1.msra.mxu0 0.0
        %1438 = vmatprep.subr.mxu0 0.0
        %1439 = vmatpush1.msra.mxu0 0.0
        %1440 = vmatprep.subr.mxu0 0.0
        %1441 = vmatpush1.msra.mxu0 0.0
        %1442 = vmatprep.subr.mxu0 0.0
        %1443 = vmatpush1.msra.mxu0 0.0
        %1444 = vmatprep.subr.mxu0 0.0
        %1445 = vmatpush1.msra.mxu0 0.0
        %1446 = vmatprep.subr.mxu0 0.0
        %1447 = vmatpush1.msra.mxu0 0.0
        %1448 = vmatprep.subr.mxu0 0.0
        %1449 = vmatpush1.msra.mxu0 0.0
        %1450 = vmatprep.subr.mxu0 0.0
        %1451 = vmatpush1.msra.mxu0 0.0
        %1452 = vmatprep.subr.mxu0 0.0
        %1453 = vmatpush1.msra.mxu0 0.0
        %1454 = vmatprep.subr.mxu0 0.0
        %1455 = vmatpush1.msra.mxu0 0.0
        %1456 = vmatprep.subr.mxu0 0.0
        %1457 = vmatpush1.msra.mxu0 0.0
        %1458 = vmatprep.subr.mxu0 0.0
        %1459 = vmatpush1.msra.mxu0 0.0
        %1460 = vmatprep.subr.mxu0 0.0
        %1461 = vmatpush1.msra.mxu0 0.0
        %1462 = vmatprep.subr.mxu0 0.0
        %1463 = vmatpush1.msra.mxu0 0.0
        %1464 = vmatprep.subr.mxu0 0.0
        %1465 = vmatpush1.msra.mxu0 0.0
        %1466 = vmatprep.subr.mxu0 0.0
        %1467 = vmatpush1.msra.mxu0 0.0
        %1468 = vmatprep.mubr.f32.mxu0 0.0
        %1469 = vmatmul.mubr.f32.gmra.mrb[0].mxu0 %v1304
        %v1470 = vpop.f32.mrb[0].mxu0
        %v1471 = vadd.f32 %v1288, %v1470
        %v1472 = vpop.f32.mrb[0].mxu0
        %v1473 = vadd.f32 %v1288, %v1472
        %1474 = vmatprep.mubr.f32.mxu0 0.0
        %1475 = vmatmul.mubr.f32.gmra.mrb[0].mxu0 %v1307
        %v1476 = vpop.f32.mrb[0].mxu0
        %v1477 = vadd.f32 %v1292, %v1476
        %v1478 = vpop.f32.mrb[0].mxu0
        %v1479 = vadd.f32 %v1292, %v1478
        %1480 = vmatprep.mubr.f32.mxu0 0.0
        %1481 = vmatmul.mubr.f32.gmra.mrb[0].mxu0 %v1310
        %v1482 = vpop.f32.mrb[0].mxu0
        %v1483 = vadd.f32 %v1296, %v1482
        %v1484 = vpop.f32.mrb[0].mxu0
        %v1485 = vadd.f32 %v1296, %v1484
        %1486 = vmatprep.mubr.f32.mxu0 0.0
        %1487 = vmatmul.mubr.f32.gmra.mrb[0].mxu0 %v1313
        %v1488 = vpop.f32.mrb[0].mxu0
        %v1489 = vadd.f32 %v1300, %v1488
        %v1490 = vpop.f32.mrb[0].mxu0
        %v1491 = vadd.f32 %v1300, %v1490
        %1492 = vdwg.mxu0
        %1493 = vmatprep.subr.mxu0 %v1255
        %1494 = vmatpush1.msra.mxu0 %v1254
        %1495 = vmatprep.subr.mxu0 %v1263
        %1496 = vmatpush1.msra.mxu0 %v1262
        %1497 = vmatprep.subr.mxu0 %v1271
        %1498 = vmatpush1.msra.mxu0 %v1270
        %1499 = vmatprep.subr.mxu0 %v1279
        %1500 = vmatpush1.msra.mxu0 %v1278
        %1501 = vmatprep.subr.mxu0 0.0
        %1502 = vmatpush1.msra.mxu0 0.0
        %1503 = vmatprep.subr.mxu0 0.0
        %1504 = vmatpush1.msra.mxu0 0.0
        %1505 = vmatprep.subr.mxu0 0.0
        %1506 = vmatpush1.msra.mxu0 0.0
        %1507 = vmatprep.subr.mxu0 0.0
        %1508 = vmatpush1.msra.mxu0 0.0
        %1509 = vmatprep.subr.mxu0 0.0
        %1510 = vmatpush1.msra.mxu0 0.0
        %1511 = vmatprep.subr.mxu0 0.0
        %1512 = vmatpush1.msra.mxu0 0.0
        %1513 = vmatprep.subr.mxu0 0.0
        %1514 = vmatpush1.msra.mxu0 0.0
        %1515 = vmatprep.subr.mxu0 0.0
        %1516 = vmatpush1.msra.mxu0 0.0
        %1517 = vmatprep.subr.mxu0 0.0
        %1518 = vmatpush1.msra.mxu0 0.0
        %1519 = vmatprep.subr.mxu0 0.0
        %1520 = vmatpush1.msra.mxu0 0.0
        %1521 = vmatprep.subr.mxu0 0.0
        %1522 = vmatpush1.msra.mxu0 0.0
        %1523 = vmatprep.subr.mxu0 0.0
        %1524 = vmatpush1.msra.mxu0 0.0
        %1525 = vmatprep.subr.mxu0 0.0
        %1526 = vmatpush1.msra.mxu0 0.0
        %1527 = vmatprep.subr.mxu0 0.0
        %1528 = vmatpush1.msra.mxu0 0.0
        %1529 = vmatprep.subr.mxu0 0.0
        %1530 = vmatpush1.msra.mxu0 0.0
        %1531 = vmatprep.subr.mxu0 0.0
        %1532 = vmatpush1.msra.mxu0 0.0
        %1533 = vmatprep.subr.mxu0 0.0
        %1534 = vmatpush1.msra.mxu0 0.0
        %1535 = vmatprep.subr.mxu0 0.0
        %1536 = vmatpush1.msra.mxu0 0.0
        %1537 = vmatprep.subr.mxu0 0.0
        %1538 = vmatpush1.msra.mxu0 0.0
        %1539 = vmatprep.subr.mxu0 0.0
        %1540 = vmatpush1.msra.mxu0 0.0
        %1541 = vmatprep.subr.mxu0 0.0
        %1542 = vmatpush1.msra.mxu0 0.0
        %1543 = vmatprep.subr.mxu0 0.0
        %1544 = vmatpush1.msra.mxu0 0.0
        %1545 = vmatprep.subr.mxu0 0.0
        %1546 = vmatpush1.msra.mxu0 0.0
        %1547 = vmatprep.subr.mxu0 0.0
        %1548 = vmatpush1.msra.mxu0 0.0
        %1549 = vmatprep.subr.mxu0 0.0
        %1550 = vmatpush1.msra.mxu0 0.0
        %1551 = vmatprep.subr.mxu0 0.0
        %1552 = vmatpush1.msra.mxu0 0.0
        %1553 = vmatprep.subr.mxu0 0.0
        %1554 = vmatpush1.msra.mxu0 0.0
        %1555 = vmatprep.subr.mxu0 0.0
        %1556 = vmatpush1.msra.mxu0 0.0
        %1557 = vmatprep.mubr.f32.mxu0 0.0
        %1558 = vmatmul.mubr.f32.gmra.mrb[0].mxu0 %v1304
        %v1559 = vpop.f32.mrb[0].mxu0
        %v1560 = vadd.f32 %v1288, %v1559
        %v1561 = vpop.f32.mrb[0].mxu0
        %v1562 = vadd.f32 %v1288, %v1561
        %1563 = vmatprep.mubr.f32.mxu0 0.0
        %1564 = vmatmul.mubr.f32.gmra.mrb[0].mxu0 %v1307
        %v1565 = vpop.f32.mrb[0].mxu0
        %v1566 = vadd.f32 %v1292, %v1565
        %v1567 = vpop.f32.mrb[0].mxu0
        %v1568 = vadd.f32 %v1292, %v1567
        %1569 = vmatprep.mubr.f32.mxu0 0.0
        %1570 = vmatmul.mubr.f32.gmra.mrb[0].mxu0 %v1310
        %v1571 = vpop.f32.mrb[0].mxu0
        %v1572 = vadd.f32 %v1296, %v1571
        %v1573 = vpop.f32.mrb[0].mxu0
        %v1574 = vadd.f32 %v1296, %v1573
        %1575 = vmatprep.mubr.f32.mxu0 0.0
        %1576 = vmatmul.mubr.f32.gmra.mrb[0].mxu0 %v1313
        %v1577 = vpop.f32.mrb[0].mxu0
        %v1578 = vadd.f32 %v1300, %v1577
        %v1579 = vpop.f32.mrb[0].mxu0
        %v1580 = vadd.f32 %v1300, %v1579
        %1581 = vdwg.mxu0
        %1582 = vmatprep.subr.mxu0 %v1257
        %1583 = vmatpush1.msra.mxu0 %v1256
        %1584 = vmatprep.subr.mxu0 %v1265
        %1585 = vmatpush1.msra.mxu0 %v1264
        %1586 = vmatprep.subr.mxu0 %v1273
        %1587 = vmatpush1.msra.mxu0 %v1272
        %1588 = vmatprep.subr.mxu0 %v1281
        %1589 = vmatpush1.msra.mxu0 %v1280
        %1590 = vmatprep.subr.mxu0 0.0
        %1591 = vmatpush1.msra.mxu0 0.0
        %1592 = vmatprep.subr.mxu0 0.0
        %1593 = vmatpush1.msra.mxu0 0.0
        %1594 = vmatprep.subr.mxu0 0.0
        %1595 = vmatpush1.msra.mxu0 0.0
        %1596 = vmatprep.subr.mxu0 0.0
        %1597 = vmatpush1.msra.mxu0 0.0
        %1598 = vmatprep.subr.mxu0 0.0
        %1599 = vmatpush1.msra.mxu0 0.0
        %1600 = vmatprep.subr.mxu0 0.0
        %1601 = vmatpush1.msra.mxu0 0.0
        %1602 = vmatprep.subr.mxu0 0.0
        %1603 = vmatpush1.msra.mxu0 0.0
        %1604 = vmatprep.subr.mxu0 0.0
        %1605 = vmatpush1.msra.mxu0 0.0
        %1606 = vmatprep.subr.mxu0 0.0
        %1607 = vmatpush1.msra.mxu0 0.0
        %1608 = vmatprep.subr.mxu0 0.0
        %1609 = vmatpush1.msra.mxu0 0.0
        %1610 = vmatprep.subr.mxu0 0.0
        %1611 = vmatpush1.msra.mxu0 0.0
        %1612 = vmatprep.subr.mxu0 0.0
        %1613 = vmatpush1.msra.mxu0 0.0
        %1614 = vmatprep.subr.mxu0 0.0
        %1615 = vmatpush1.msra.mxu0 0.0
        %1616 = vmatprep.subr.mxu0 0.0
        %1617 = vmatpush1.msra.mxu0 0.0
        %1618 = vmatprep.subr.mxu0 0.0
        %1619 = vmatpush1.msra.mxu0 0.0
        %1620 = vmatprep.subr.mxu0 0.0
        %1621 = vmatpush1.msra.mxu0 0.0
        %1622 = vmatprep.subr.mxu0 0.0
        %1623 = vmatpush1.msra.mxu0 0.0
        %1624 = vmatprep.subr.mxu0 0.0
        %1625 = vmatpush1.msra.mxu0 0.0
        %1626 = vmatprep.subr.mxu0 0.0
        %1627 = vmatpush1.msra.mxu0 0.0
        %1628 = vmatprep.subr.mxu0 0.0
        %1629 = vmatpush1.msra.mxu0 0.0
        %1630 = vmatprep.subr.mxu0 0.0
        %1631 = vmatpush1.msra.mxu0 0.0
        %1632 = vmatprep.subr.mxu0 0.0
        %1633 = vmatpush1.msra.mxu0 0.0
        %1634 = vmatprep.subr.mxu0 0.0
        %1635 = vmatpush1.msra.mxu0 0.0
        %1636 = vmatprep.subr.mxu0 0.0
        %1637 = vmatpush1.msra.mxu0 0.0
        %1638 = vmatprep.subr.mxu0 0.0
        %1639 = vmatpush1.msra.mxu0 0.0
        %1640 = vmatprep.subr.mxu0 0.0
        %1641 = vmatpush1.msra.mxu0 0.0
        %1642 = vmatprep.subr.mxu0 0.0
        %1643 = vmatpush1.msra.mxu0 0.0
        %1644 = vmatprep.subr.mxu0 0.0
        %1645 = vmatpush1.msra.mxu0 0.0
        %1646 = vmatprep.mubr.f32.mxu0 0.0
        %1647 = vmatmul.mubr.f32.gmra.mrb[0].mxu0 %v1304
        %v1648 = vpop.f32.mrb[0].mxu0
        %v1649 = vadd.f32 %v1288, %v1648
        %v1650 = vpop.f32.mrb[0].mxu0
        %v1651 = vadd.f32 %v1288, %v1650
        %1652 = vmatprep.mubr.f32.mxu0 0.0
        %1653 = vmatmul.mubr.f32.gmra.mrb[0].mxu0 %v1307
        %v1654 = vpop.f32.mrb[0].mxu0
        %v1655 = vadd.f32 %v1292, %v1654
        %v1656 = vpop.f32.mrb[0].mxu0
        %v1657 = vadd.f32 %v1292, %v1656
        %1658 = vmatprep.mubr.f32.mxu0 0.0
        %1659 = vmatmul.mubr.f32.gmra.mrb[0].mxu0 %v1310
        %v1660 = vpop.f32.mrb[0].mxu0
        %v1661 = vadd.f32 %v1296, %v1660
        %v1662 = vpop.f32.mrb[0].mxu0
        %v1663 = vadd.f32 %v1296, %v1662
        %1664 = vmatprep.mubr.f32.mxu0 0.0
        %1665 = vmatmul.mubr.f32.gmra.mrb[0].mxu0 %v1313
        %v1666 = vpop.f32.mrb[0].mxu0
        %v1667 = vadd.f32 %v1300, %v1666
        %v1668 = vpop.f32.mrb[0].mxu0
        %v1669 = vadd.f32 %v1300, %v1668
        %1670 = vdwg.mxu0
        %v1671 = vlaneseq
        %v1672 = vshrl.u32 %v1671, 7
        %v1673 = vsub.s32 2, %v1672
        %v1674 = vrot.slane %v792, %v1673
        %v1675 = vlaneseq
        %v1676 = vshrl.u32 %v1675, 7
        %v1677 = vsub.s32 2, %v1676
        %v1678 = vrot.slane %v794, %v1677
        %v1679 = vlaneseq
        %v1680 = vshrl.u32 %v1679, 7
        %v1681 = vsub.s32 2, %v1680
        %v1682 = vrot.slane %v863, %v1681
        %v1683 = vlaneseq
        %v1684 = vshrl.u32 %v1683, 7
        %v1685 = vsub.s32 2, %v1684
        %v1686 = vrot.slane %v865, %v1685
        %v1687 = vlaneseq
        %v1688 = vshrl.u32 %v1687, 7
        %v1689 = vsub.s32 2, %v1688
        %v1690 = vrot.slane %v934, %v1689
        %v1691 = vlaneseq
        %v1692 = vshrl.u32 %v1691, 7
        %v1693 = vsub.s32 2, %v1692
        %v1694 = vrot.slane %v936, %v1693
        %v1695 = vlaneseq
        %v1696 = vshrl.u32 %v1695, 7
        %v1697 = vsub.s32 2, %v1696
        %v1698 = vrot.slane %v1005, %v1697
        %v1699 = vlaneseq
        %v1700 = vshrl.u32 %v1699, 7
        %v1701 = vsub.s32 2, %v1700
        %v1702 = vrot.slane %v1007, %v1701
        %v1703 = vmul.f32 %v1674, %v1382
        %v1704 = vmul.f32 %v1678, %v1384
        %v1705 = vmul.f32 %v1682, %v1471
        %v1706 = vmul.f32 %v1686, %v1473
        %v1707 = vmul.f32 %v1690, %v1560
        %v1708 = vmul.f32 %v1694, %v1562
        %v1709 = vmul.f32 %v1698, %v1649
        %v1710 = vmul.f32 %v1702, %v1651
        %v1711 = vmul.f32 %v1674, %v1388
        %v1712 = vmul.f32 %v1678, %v1390
        %v1713 = vmul.f32 %v1682, %v1477
        %v1714 = vmul.f32 %v1686, %v1479
        %v1715 = vmul.f32 %v1690, %v1566
        %v1716 = vmul.f32 %v1694, %v1568
        %v1717 = vmul.f32 %v1698, %v1655
        %v1718 = vmul.f32 %v1702, %v1657
        %v1719 = vmul.f32 %v1674, %v1394
        %v1720 = vmul.f32 %v1678, %v1396
        %v1721 = vmul.f32 %v1682, %v1483
        %v1722 = vmul.f32 %v1686, %v1485
        %v1723 = vmul.f32 %v1690, %v1572
        %v1724 = vmul.f32 %v1694, %v1574
        %v1725 = vmul.f32 %v1698, %v1661
        %v1726 = vmul.f32 %v1702, %v1663
        %v1727 = vmul.f32 %v1674, %v1400
        %v1728 = vmul.f32 %v1678, %v1402
        %v1729 = vmul.f32 %v1682, %v1489
        %v1730 = vmul.f32 %v1686, %v1491
        %v1731 = vmul.f32 %v1690, %v1578
        %v1732 = vmul.f32 %v1694, %v1580
        %v1733 = vmul.f32 %v1698, %v1667
        %v1734 = vmul.f32 %v1702, %v1669
        %v1735 = vlaneseq
        %v1736 = vshrl.u32 %v1735, 7
        %v1737 = vsub.s32 3, %v1736
        %v1738 = vrot.slane %v792, %v1737
        %v1739 = vlaneseq
        %v1740 = vshrl.u32 %v1739, 7
        %v1741 = vsub.s32 3, %v1740
        %v1742 = vrot.slane %v794, %v1741
        %v1743 = vlaneseq
        %v1744 = vshrl.u32 %v1743, 7
        %v1745 = vsub.s32 3, %v1744
        %v1746 = vrot.slane %v863, %v1745
        %v1747 = vlaneseq
        %v1748 = vshrl.u32 %v1747, 7
        %v1749 = vsub.s32 3, %v1748
        %v1750 = vrot.slane %v865, %v1749
        %v1751 = vlaneseq
        %v1752 = vshrl.u32 %v1751, 7
        %v1753 = vsub.s32 3, %v1752
        %v1754 = vrot.slane %v934, %v1753
        %v1755 = vlaneseq
        %v1756 = vshrl.u32 %v1755, 7
        %v1757 = vsub.s32 3, %v1756
        %v1758 = vrot.slane %v936, %v1757
        %v1759 = vlaneseq
        %v1760 = vshrl.u32 %v1759, 7
        %v1761 = vsub.s32 3, %v1760
        %v1762 = vrot.slane %v1005, %v1761
        %v1763 = vlaneseq
        %v1764 = vshrl.u32 %v1763, 7
        %v1765 = vsub.s32 3, %v1764
        %v1766 = vrot.slane %v1007, %v1765
        %v1767 = vadd.f32 %v1703, %v1738
        %v1768 = vadd.f32 %v1704, %v1742
        %v1769 = vadd.f32 %v1705, %v1746
        %v1770 = vadd.f32 %v1706, %v1750
        %v1771 = vadd.f32 %v1707, %v1754
        %v1772 = vadd.f32 %v1708, %v1758
        %v1773 = vadd.f32 %v1709, %v1762
        %v1774 = vadd.f32 %v1710, %v1766
        %v1775 = vadd.f32 %v1711, %v1738
        %v1776 = vadd.f32 %v1712, %v1742
        %v1777 = vadd.f32 %v1713, %v1746
        %v1778 = vadd.f32 %v1714, %v1750
        %v1779 = vadd.f32 %v1715, %v1754
        %v1780 = vadd.f32 %v1716, %v1758
        %v1781 = vadd.f32 %v1717, %v1762
        %v1782 = vadd.f32 %v1718, %v1766
        %v1783 = vadd.f32 %v1719, %v1738
        %v1784 = vadd.f32 %v1720, %v1742
        %v1785 = vadd.f32 %v1721, %v1746
        %v1786 = vadd.f32 %v1722, %v1750
        %v1787 = vadd.f32 %v1723, %v1754
        %v1788 = vadd.f32 %v1724, %v1758
        %v1789 = vadd.f32 %v1725, %v1762
        %v1790 = vadd.f32 %v1726, %v1766
        %v1791 = vadd.f32 %v1727, %v1738
        %v1792 = vadd.f32 %v1728, %v1742
        %v1793 = vadd.f32 %v1729, %v1746
        %v1794 = vadd.f32 %v1730, %v1750
        %v1795 = vadd.f32 %v1731, %v1754
        %v1796 = vadd.f32 %v1732, %v1758
        %v1797 = vadd.f32 %v1733, %v1762
        %v1798 = vadd.f32 %v1734, %v1766
        %s1799 = scalar_lea.vmem [#allocation2], 32
        %v1800 = vld [vmem:[%s1799] sm:$0xff]
        %v1801 = vld [vmem:[%s1799 + $0x8] sm:$0xff]
        %v1802 = vld [vmem:[%s1799 + $0x10] sm:$0xff]
        %v1803 = vld [vmem:[%s1799 + $0x18] sm:$0xff]
        %1804 = vset.pattern.permute.xlu0 3
        %1805 = vperm.xlu0 %1804, %v1009
        %v1806 = vpop.permute.xlu0 %1805
        %1808 = vset.pattern.permute.xlu0 3
        %1809 = vperm.xlu0 %1808, %v1010
        %v1810 = vpop.permute.xlu0 %1809
        %1812 = vset.pattern.permute.xlu0 3
        %1813 = vperm.xlu0 %1812, %v1011
        %v1814 = vpop.permute.xlu0 %1813
        %1816 = vset.pattern.permute.xlu0 3
        %1817 = vperm.xlu0 %1816, %v1012
        %v1818 = vpop.permute.xlu0 %1817
        %v1821 = vsel %vm1302, %v1800, 0
        %v1824 = vsel %vm1302, %v1801, 0
        %v1827 = vsel %vm1302, %v1802, 0
        %v1830 = vsel %vm1302, %v1803, 0
        %1832 = vmatprep.subr.mxu0 %v1768
        %1833 = vmatpush1.msra.mxu0 %v1767
        %1834 = vmatprep.subr.mxu0 %v1776
        %1835 = vmatpush1.msra.mxu0 %v1775
        %1836 = vmatprep.subr.mxu0 %v1784
        %1837 = vmatpush1.msra.mxu0 %v1783
        %1838 = vmatprep.subr.mxu0 %v1792
        %1839 = vmatpush1.msra.mxu0 %v1791
        %1840 = vmatprep.subr.mxu0 0.0
        %1841 = vmatpush1.msra.mxu0 0.0
        %1842 = vmatprep.subr.mxu0 0.0
        %1843 = vmatpush1.msra.mxu0 0.0
        %1844 = vmatprep.subr.mxu0 0.0
        %1845 = vmatpush1.msra.mxu0 0.0
        %1846 = vmatprep.subr.mxu0 0.0
        %1847 = vmatpush1.msra.mxu0 0.0
        %1848 = vmatprep.subr.mxu0 0.0
        %1849 = vmatpush1.msra.mxu0 0.0
        %1850 = vmatprep.subr.mxu0 0.0
        %1851 = vmatpush1.msra.mxu0 0.0
        %1852 = vmatprep.subr.mxu0 0.0
        %1853 = vmatpush1.msra.mxu0 0.0
        %1854 = vmatprep.subr.mxu0 0.0
        %1855 = vmatpush1.msra.mxu0 0.0
        %1856 = vmatprep.subr.mxu0 0.0
        %1857 = vmatpush1.msra.mxu0 0.0
        %1858 = vmatprep.subr.mxu0 0.0
        %1859 = vmatpush1.msra.mxu0 0.0
        %1860 = vmatprep.subr.mxu0 0.0
        %1861 = vmatpush1.msra.mxu0 0.0
        %1862 = vmatprep.subr.mxu0 0.0
        %1863 = vmatpush1.msra.mxu0 0.0
        %1864 = vmatprep.subr.mxu0 0.0
        %1865 = vmatpush1.msra.mxu0 0.0
        %1866 = vmatprep.subr.mxu0 0.0
        %1867 = vmatpush1.msra.mxu0 0.0
        %1868 = vmatprep.subr.mxu0 0.0
        %1869 = vmatpush1.msra.mxu0 0.0
        %1870 = vmatprep.subr.mxu0 0.0
        %1871 = vmatpush1.msra.mxu0 0.0
        %1872 = vmatprep.subr.mxu0 0.0
        %1873 = vmatpush1.msra.mxu0 0.0
        %1874 = vmatprep.subr.mxu0 0.0
        %1875 = vmatpush1.msra.mxu0 0.0
        %1876 = vmatprep.subr.mxu0 0.0
        %1877 = vmatpush1.msra.mxu0 0.0
        %1878 = vmatprep.subr.mxu0 0.0
        %1879 = vmatpush1.msra.mxu0 0.0
        %1880 = vmatprep.subr.mxu0 0.0
        %1881 = vmatpush1.msra.mxu0 0.0
        %1882 = vmatprep.subr.mxu0 0.0
        %1883 = vmatpush1.msra.mxu0 0.0
        %1884 = vmatprep.subr.mxu0 0.0
        %1885 = vmatpush1.msra.mxu0 0.0
        %1886 = vmatprep.subr.mxu0 0.0
        %1887 = vmatpush1.msra.mxu0 0.0
        %1888 = vmatprep.subr.mxu0 0.0
        %1889 = vmatpush1.msra.mxu0 0.0
        %1890 = vmatprep.subr.mxu0 0.0
        %1891 = vmatpush1.msra.mxu0 0.0
        %1892 = vmatprep.subr.mxu0 0.0
        %1893 = vmatpush1.msra.mxu0 0.0
        %1894 = vmatprep.subr.mxu0 0.0
        %1895 = vmatpush1.msra.mxu0 0.0
        %1896 = vmatprep.mubr.f32.mxu0 0.0
        %1897 = vmatmul.mubr.f32.gmra.mrb[0].mxu0 %v1821
        %v1898 = vpop.f32.mrb[0].mxu0
        %v1899 = vadd.f32 %v1806, %v1898
        %v1900 = vpop.f32.mrb[0].mxu0
        %v1901 = vadd.f32 %v1806, %v1900
        %1902 = vmatprep.mubr.f32.mxu0 0.0
        %1903 = vmatmul.mubr.f32.gmra.mrb[0].mxu0 %v1824
        %v1904 = vpop.f32.mrb[0].mxu0
        %v1905 = vadd.f32 %v1810, %v1904
        %v1906 = vpop.f32.mrb[0].mxu0
        %v1907 = vadd.f32 %v1810, %v1906
        %1908 = vmatprep.mubr.f32.mxu0 0.0
        %1909 = vmatmul.mubr.f32.gmra.mrb[0].mxu0 %v1827
        %v1910 = vpop.f32.mrb[0].mxu0
        %v1911 = vadd.f32 %v1814, %v1910
        %v1912 = vpop.f32.mrb[0].mxu0
        %v1913 = vadd.f32 %v1814, %v1912
        %1914 = vmatprep.mubr.f32.mxu0 0.0
        %1915 = vmatmul.mubr.f32.gmra.mrb[0].mxu0 %v1830
        %v1916 = vpop.f32.mrb[0].mxu0
        %v1917 = vadd.f32 %v1818, %v1916
        %v1918 = vpop.f32.mrb[0].mxu0
        %v1919 = vadd.f32 %v1818, %v1918
        %1920 = vdwg.mxu0
        %1921 = vmatprep.subr.mxu0 %v1770
        %1922 = vmatpush1.msra.mxu0 %v1769
        %1923 = vmatprep.subr.mxu0 %v1778
        %1924 = vmatpush1.msra.mxu0 %v1777
        %1925 = vmatprep.subr.mxu0 %v1786
        %1926 = vmatpush1.msra.mxu0 %v1785
        %1927 = vmatprep.subr.mxu0 %v1794
        %1928 = vmatpush1.msra.mxu0 %v1793
        %1929 = vmatprep.subr.mxu0 0.0
        %1930 = vmatpush1.msra.mxu0 0.0
        %1931 = vmatprep.subr.mxu0 0.0
        %1932 = vmatpush1.msra.mxu0 0.0
        %1933 = vmatprep.subr.mxu0 0.0
        %1934 = vmatpush1.msra.mxu0 0.0
        %1935 = vmatprep.subr.mxu0 0.0
        %1936 = vmatpush1.msra.mxu0 0.0
        %1937 = vmatprep.subr.mxu0 0.0
        %1938 = vmatpush1.msra.mxu0 0.0
        %1939 = vmatprep.subr.mxu0 0.0
        %1940 = vmatpush1.msra.mxu0 0.0
        %1941 = vmatprep.subr.mxu0 0.0
        %1942 = vmatpush1.msra.mxu0 0.0
        %1943 = vmatprep.subr.mxu0 0.0
        %1944 = vmatpush1.msra.mxu0 0.0
        %1945 = vmatprep.subr.mxu0 0.0
        %1946 = vmatpush1.msra.mxu0 0.0
        %1947 = vmatprep.subr.mxu0 0.0
        %1948 = vmatpush1.msra.mxu0 0.0
        %1949 = vmatprep.subr.mxu0 0.0
        %1950 = vmatpush1.msra.mxu0 0.0
        %1951 = vmatprep.subr.mxu0 0.0
        %1952 = vmatpush1.msra.mxu0 0.0
        %1953 = vmatprep.subr.mxu0 0.0
        %1954 = vmatpush1.msra.mxu0 0.0
        %1955 = vmatprep.subr.mxu0 0.0
        %1956 = vmatpush1.msra.mxu0 0.0
        %1957 = vmatprep.subr.mxu0 0.0
        %1958 = vmatpush1.msra.mxu0 0.0
        %1959 = vmatprep.subr.mxu0 0.0
        %1960 = vmatpush1.msra.mxu0 0.0
        %1961 = vmatprep.subr.mxu0 0.0
        %1962 = vmatpush1.msra.mxu0 0.0
        %1963 = vmatprep.subr.mxu0 0.0
        %1964 = vmatpush1.msra.mxu0 0.0
        %1965 = vmatprep.subr.mxu0 0.0
        %1966 = vmatpush1.msra.mxu0 0.0
        %1967 = vmatprep.subr.mxu0 0.0
        %1968 = vmatpush1.msra.mxu0 0.0
        %1969 = vmatprep.subr.mxu0 0.0
        %1970 = vmatpush1.msra.mxu0 0.0
        %1971 = vmatprep.subr.mxu0 0.0
        %1972 = vmatpush1.msra.mxu0 0.0
        %1973 = vmatprep.subr.mxu0 0.0
        %1974 = vmatpush1.msra.mxu0 0.0
        %1975 = vmatprep.subr.mxu0 0.0
        %1976 = vmatpush1.msra.mxu0 0.0
        %1977 = vmatprep.subr.mxu0 0.0
        %1978 = vmatpush1.msra.mxu0 0.0
        %1979 = vmatprep.subr.mxu0 0.0
        %1980 = vmatpush1.msra.mxu0 0.0
        %1981 = vmatprep.subr.mxu0 0.0
        %1982 = vmatpush1.msra.mxu0 0.0
        %1983 = vmatprep.subr.mxu0 0.0
        %1984 = vmatpush1.msra.mxu0 0.0
        %1985 = vmatprep.mubr.f32.mxu0 0.0
        %1986 = vmatmul.mubr.f32.gmra.mrb[0].mxu0 %v1821
        %v1987 = vpop.f32.mrb[0].mxu0
        %v1988 = vadd.f32 %v1806, %v1987
        %v1989 = vpop.f32.mrb[0].mxu0
        %v1990 = vadd.f32 %v1806, %v1989
        %1991 = vmatprep.mubr.f32.mxu0 0.0
        %1992 = vmatmul.mubr.f32.gmra.mrb[0].mxu0 %v1824
        %v1993 = vpop.f32.mrb[0].mxu0
        %v1994 = vadd.f32 %v1810, %v1993
        %v1995 = vpop.f32.mrb[0].mxu0
        %v1996 = vadd.f32 %v1810, %v1995
        %1997 = vmatprep.mubr.f32.mxu0 0.0
        %1998 = vmatmul.mubr.f32.gmra.mrb[0].mxu0 %v1827
        %v1999 = vpop.f32.mrb[0].mxu0
        %v2000 = vadd.f32 %v1814, %v1999
        %v2001 = vpop.f32.mrb[0].mxu0
        %v2002 = vadd.f32 %v1814, %v2001
        %2003 = vmatprep.mubr.f32.mxu0 0.0
        %2004 = vmatmul.mubr.f32.gmra.mrb[0].mxu0 %v1830
        %v2005 = vpop.f32.mrb[0].mxu0
        %v2006 = vadd.f32 %v1818, %v2005
        %v2007 = vpop.f32.mrb[0].mxu0
        %v2008 = vadd.f32 %v1818, %v2007
        %2009 = vdwg.mxu0
        %2010 = vmatprep.subr.mxu0 %v1772
        %2011 = vmatpush1.msra.mxu0 %v1771
        %2012 = vmatprep.subr.mxu0 %v1780
        %2013 = vmatpush1.msra.mxu0 %v1779
        %2014 = vmatprep.subr.mxu0 %v1788
        %2015 = vmatpush1.msra.mxu0 %v1787
        %2016 = vmatprep.subr.mxu0 %v1796
        %2017 = vmatpush1.msra.mxu0 %v1795
        %2018 = vmatprep.subr.mxu0 0.0
        %2019 = vmatpush1.msra.mxu0 0.0
        %2020 = vmatprep.subr.mxu0 0.0
        %2021 = vmatpush1.msra.mxu0 0.0
        %2022 = vmatprep.subr.mxu0 0.0
        %2023 = vmatpush1.msra.mxu0 0.0
        %2024 = vmatprep.subr.mxu0 0.0
        %2025 = vmatpush1.msra.mxu0 0.0
        %2026 = vmatprep.subr.mxu0 0.0
        %2027 = vmatpush1.msra.mxu0 0.0
        %2028 = vmatprep.subr.mxu0 0.0
        %2029 = vmatpush1.msra.mxu0 0.0
        %2030 = vmatprep.subr.mxu0 0.0
        %2031 = vmatpush1.msra.mxu0 0.0
        %2032 = vmatprep.subr.mxu0 0.0
        %2033 = vmatpush1.msra.mxu0 0.0
        %2034 = vmatprep.subr.mxu0 0.0
        %2035 = vmatpush1.msra.mxu0 0.0
        %2036 = vmatprep.subr.mxu0 0.0
        %2037 = vmatpush1.msra.mxu0 0.0
        %2038 = vmatprep.subr.mxu0 0.0
        %2039 = vmatpush1.msra.mxu0 0.0
        %2040 = vmatprep.subr.mxu0 0.0
        %2041 = vmatpush1.msra.mxu0 0.0
        %2042 = vmatprep.subr.mxu0 0.0
        %2043 = vmatpush1.msra.mxu0 0.0
        %2044 = vmatprep.subr.mxu0 0.0
        %2045 = vmatpush1.msra.mxu0 0.0
        %2046 = vmatprep.subr.mxu0 0.0
        %2047 = vmatpush1.msra.mxu0 0.0
        %2048 = vmatprep.subr.mxu0 0.0
        %2049 = vmatpush1.msra.mxu0 0.0
        %2050 = vmatprep.subr.mxu0 0.0
        %2051 = vmatpush1.msra.mxu0 0.0
        %2052 = vmatprep.subr.mxu0 0.0
        %2053 = vmatpush1.msra.mxu0 0.0
        %2054 = vmatprep.subr.mxu0 0.0
        %2055 = vmatpush1.msra.mxu0 0.0
        %2056 = vmatprep.subr.mxu0 0.0
        %2057 = vmatpush1.msra.mxu0 0.0
        %2058 = vmatprep.subr.mxu0 0.0
        %2059 = vmatpush1.msra.mxu0 0.0
        %2060 = vmatprep.subr.mxu0 0.0
        %2061 = vmatpush1.msra.mxu0 0.0
        %2062 = vmatprep.subr.mxu0 0.0
        %2063 = vmatpush1.msra.mxu0 0.0
        %2064 = vmatprep.subr.mxu0 0.0
        %2065 = vmatpush1.msra.mxu0 0.0
        %2066 = vmatprep.subr.mxu0 0.0
        %2067 = vmatpush1.msra.mxu0 0.0
        %2068 = vmatprep.subr.mxu0 0.0
        %2069 = vmatpush1.msra.mxu0 0.0
        %2070 = vmatprep.subr.mxu0 0.0
        %2071 = vmatpush1.msra.mxu0 0.0
        %2072 = vmatprep.subr.mxu0 0.0
        %2073 = vmatpush1.msra.mxu0 0.0
        %2074 = vmatprep.mubr.f32.mxu0 0.0
        %2075 = vmatmul.mubr.f32.gmra.mrb[0].mxu0 %v1821
        %v2076 = vpop.f32.mrb[0].mxu0
        %v2077 = vadd.f32 %v1806, %v2076
        %v2078 = vpop.f32.mrb[0].mxu0
        %v2079 = vadd.f32 %v1806, %v2078
        %2080 = vmatprep.mubr.f32.mxu0 0.0
        %2081 = vmatmul.mubr.f32.gmra.mrb[0].mxu0 %v1824
        %v2082 = vpop.f32.mrb[0].mxu0
        %v2083 = vadd.f32 %v1810, %v2082
        %v2084 = vpop.f32.mrb[0].mxu0
        %v2085 = vadd.f32 %v1810, %v2084
        %2086 = vmatprep.mubr.f32.mxu0 0.0
        %2087 = vmatmul.mubr.f32.gmra.mrb[0].mxu0 %v1827
        %v2088 = vpop.f32.mrb[0].mxu0
        %v2089 = vadd.f32 %v1814, %v2088
        %v2090 = vpop.f32.mrb[0].mxu0
        %v2091 = vadd.f32 %v1814, %v2090
        %2092 = vmatprep.mubr.f32.mxu0 0.0
        %2093 = vmatmul.mubr.f32.gmra.mrb[0].mxu0 %v1830
        %v2094 = vpop.f32.mrb[0].mxu0
        %v2095 = vadd.f32 %v1818, %v2094
        %v2096 = vpop.f32.mrb[0].mxu0
        %v2097 = vadd.f32 %v1818, %v2096
        %2098 = vdwg.mxu0
        %2099 = vmatprep.subr.mxu0 %v1774
        %2100 = vmatpush1.msra.mxu0 %v1773
        %2101 = vmatprep.subr.mxu0 %v1782
        %2102 = vmatpush1.msra.mxu0 %v1781
        %2103 = vmatprep.subr.mxu0 %v1790
        %2104 = vmatpush1.msra.mxu0 %v1789
        %2105 = vmatprep.subr.mxu0 %v1798
        %2106 = vmatpush1.msra.mxu0 %v1797
        %2107 = vmatprep.subr.mxu0 0.0
        %2108 = vmatpush1.msra.mxu0 0.0
        %2109 = vmatprep.subr.mxu0 0.0
        %2110 = vmatpush1.msra.mxu0 0.0
        %2111 = vmatprep.subr.mxu0 0.0
        %2112 = vmatpush1.msra.mxu0 0.0
        %2113 = vmatprep.subr.mxu0 0.0
        %2114 = vmatpush1.msra.mxu0 0.0
        %2115 = vmatprep.subr.mxu0 0.0
        %2116 = vmatpush1.msra.mxu0 0.0
        %2117 = vmatprep.subr.mxu0 0.0
        %2118 = vmatpush1.msra.mxu0 0.0
        %2119 = vmatprep.subr.mxu0 0.0
        %2120 = vmatpush1.msra.mxu0 0.0
        %2121 = vmatprep.subr.mxu0 0.0
        %2122 = vmatpush1.msra.mxu0 0.0
        %2123 = vmatprep.subr.mxu0 0.0
        %2124 = vmatpush1.msra.mxu0 0.0
        %2125 = vmatprep.subr.mxu0 0.0
        %2126 = vmatpush1.msra.mxu0 0.0
        %2127 = vmatprep.subr.mxu0 0.0
        %2128 = vmatpush1.msra.mxu0 0.0
        %2129 = vmatprep.subr.mxu0 0.0
        %2130 = vmatpush1.msra.mxu0 0.0
        %2131 = vmatprep.subr.mxu0 0.0
        %2132 = vmatpush1.msra.mxu0 0.0
        %2133 = vmatprep.subr.mxu0 0.0
        %2134 = vmatpush1.msra.mxu0 0.0
        %2135 = vmatprep.subr.mxu0 0.0
        %2136 = vmatpush1.msra.mxu0 0.0
        %2137 = vmatprep.subr.mxu0 0.0
        %2138 = vmatpush1.msra.mxu0 0.0
        %2139 = vmatprep.subr.mxu0 0.0
        %2140 = vmatpush1.msra.mxu0 0.0
        %2141 = vmatprep.subr.mxu0 0.0
        %2142 = vmatpush1.msra.mxu0 0.0
        %2143 = vmatprep.subr.mxu0 0.0
        %2144 = vmatpush1.msra.mxu0 0.0
        %2145 = vmatprep.subr.mxu0 0.0
        %2146 = vmatpush1.msra.mxu0 0.0
        %2147 = vmatprep.subr.mxu0 0.0
        %2148 = vmatpush1.msra.mxu0 0.0
        %2149 = vmatprep.subr.mxu0 0.0
        %2150 = vmatpush1.msra.mxu0 0.0
        %2151 = vmatprep.subr.mxu0 0.0
        %2152 = vmatpush1.msra.mxu0 0.0
        %2153 = vmatprep.subr.mxu0 0.0
        %2154 = vmatpush1.msra.mxu0 0.0
        %2155 = vmatprep.subr.mxu0 0.0
        %2156 = vmatpush1.msra.mxu0 0.0
        %2157 = vmatprep.subr.mxu0 0.0
        %2158 = vmatpush1.msra.mxu0 0.0
        %2159 = vmatprep.subr.mxu0 0.0
        %2160 = vmatpush1.msra.mxu0 0.0
        %2161 = vmatprep.subr.mxu0 0.0
        %2162 = vmatpush1.msra.mxu0 0.0
        %2163 = vmatprep.mubr.f32.mxu0 0.0
        %2164 = vmatmul.mubr.f32.gmra.mrb[0].mxu0 %v1821
        %v2165 = vpop.f32.mrb[0].mxu0
        %v2166 = vadd.f32 %v1806, %v2165
        %v2167 = vpop.f32.mrb[0].mxu0
        %v2168 = vadd.f32 %v1806, %v2167
        %2169 = vmatprep.mubr.f32.mxu0 0.0
        %2170 = vmatmul.mubr.f32.gmra.mrb[0].mxu0 %v1824
        %v2171 = vpop.f32.mrb[0].mxu0
        %v2172 = vadd.f32 %v1810, %v2171
        %v2173 = vpop.f32.mrb[0].mxu0
        %v2174 = vadd.f32 %v1810, %v2173
        %2175 = vmatprep.mubr.f32.mxu0 0.0
        %2176 = vmatmul.mubr.f32.gmra.mrb[0].mxu0 %v1827
        %v2177 = vpop.f32.mrb[0].mxu0
        %v2178 = vadd.f32 %v1814, %v2177
        %v2179 = vpop.f32.mrb[0].mxu0
        %v2180 = vadd.f32 %v1814, %v2179
        %2181 = vmatprep.mubr.f32.mxu0 0.0
        %2182 = vmatmul.mubr.f32.gmra.mrb[0].mxu0 %v1830
        %v2183 = vpop.f32.mrb[0].mxu0
        %v2184 = vadd.f32 %v1818, %v2183
        %v2185 = vpop.f32.mrb[0].mxu0
        %v2186 = vadd.f32 %v1818, %v2185
        %2187 = vdwg.mxu0
        %v2188 = vlaneseq
        %v2189 = vshrl.u32 %v2188, 7
        %v2190 = vsub.s32 4, %v2189
        %v2191 = vrot.slane %v792, %v2190
        %v2192 = vlaneseq
        %v2193 = vshrl.u32 %v2192, 7
        %v2194 = vsub.s32 4, %v2193
        %v2195 = vrot.slane %v794, %v2194
        %v2196 = vlaneseq
        %v2197 = vshrl.u32 %v2196, 7
        %v2198 = vsub.s32 4, %v2197
        %v2199 = vrot.slane %v863, %v2198
        %v2200 = vlaneseq
        %v2201 = vshrl.u32 %v2200, 7
        %v2202 = vsub.s32 4, %v2201
        %v2203 = vrot.slane %v865, %v2202
        %v2204 = vlaneseq
        %v2205 = vshrl.u32 %v2204, 7
        %v2206 = vsub.s32 4, %v2205
        %v2207 = vrot.slane %v934, %v2206
        %v2208 = vlaneseq
        %v2209 = vshrl.u32 %v2208, 7
        %v2210 = vsub.s32 4, %v2209
        %v2211 = vrot.slane %v936, %v2210
        %v2212 = vlaneseq
        %v2213 = vshrl.u32 %v2212, 7
        %v2214 = vsub.s32 4, %v2213
        %v2215 = vrot.slane %v1005, %v2214
        %v2216 = vlaneseq
        %v2217 = vshrl.u32 %v2216, 7
        %v2218 = vsub.s32 4, %v2217
        %v2219 = vrot.slane %v1007, %v2218
        %v2220 = vmul.f32 %v2191, %v1899
        %v2221 = vmul.f32 %v2195, %v1901
        %v2222 = vmul.f32 %v2199, %v1988
        %v2223 = vmul.f32 %v2203, %v1990
        %v2224 = vmul.f32 %v2207, %v2077
        %v2225 = vmul.f32 %v2211, %v2079
        %v2226 = vmul.f32 %v2215, %v2166
        %v2227 = vmul.f32 %v2219, %v2168
        %v2228 = vmul.f32 %v2191, %v1905
        %v2229 = vmul.f32 %v2195, %v1907
        %v2230 = vmul.f32 %v2199, %v1994
        %v2231 = vmul.f32 %v2203, %v1996
        %v2232 = vmul.f32 %v2207, %v2083
        %v2233 = vmul.f32 %v2211, %v2085
        %v2234 = vmul.f32 %v2215, %v2172
        %v2235 = vmul.f32 %v2219, %v2174
        %v2236 = vmul.f32 %v2191, %v1911
        %v2237 = vmul.f32 %v2195, %v1913
        %v2238 = vmul.f32 %v2199, %v2000
        %v2239 = vmul.f32 %v2203, %v2002
        %v2240 = vmul.f32 %v2207, %v2089
        %v2241 = vmul.f32 %v2211, %v2091
        %v2242 = vmul.f32 %v2215, %v2178
        %v2243 = vmul.f32 %v2219, %v2180
        %v2244 = vmul.f32 %v2191, %v1917
        %v2245 = vmul.f32 %v2195, %v1919
        %v2246 = vmul.f32 %v2199, %v2006
        %v2247 = vmul.f32 %v2203, %v2008
        %v2248 = vmul.f32 %v2207, %v2095
        %v2249 = vmul.f32 %v2211, %v2097
        %v2250 = vmul.f32 %v2215, %v2184
        %v2251 = vmul.f32 %v2219, %v2186
        %v2252 = vlaneseq
        %v2253 = vshrl.u32 %v2252, 7
        %v2254 = vsub.s32 5, %v2253
        %v2255 = vrot.slane %v792, %v2254
        %v2256 = vlaneseq
        %v2257 = vshrl.u32 %v2256, 7
        %v2258 = vsub.s32 5, %v2257
        %v2259 = vrot.slane %v794, %v2258
        %v2260 = vlaneseq
        %v2261 = vshrl.u32 %v2260, 7
        %v2262 = vsub.s32 5, %v2261
        %v2263 = vrot.slane %v863, %v2262
        %v2264 = vlaneseq
        %v2265 = vshrl.u32 %v2264, 7
        %v2266 = vsub.s32 5, %v2265
        %v2267 = vrot.slane %v865, %v2266
        %v2268 = vlaneseq
        %v2269 = vshrl.u32 %v2268, 7
        %v2270 = vsub.s32 5, %v2269
        %v2271 = vrot.slane %v934, %v2270
        %v2272 = vlaneseq
        %v2273 = vshrl.u32 %v2272, 7
        %v2274 = vsub.s32 5, %v2273
        %v2275 = vrot.slane %v936, %v2274
        %v2276 = vlaneseq
        %v2277 = vshrl.u32 %v2276, 7
        %v2278 = vsub.s32 5, %v2277
        %v2279 = vrot.slane %v1005, %v2278
        %v2280 = vlaneseq
        %v2281 = vshrl.u32 %v2280, 7
        %v2282 = vsub.s32 5, %v2281
        %v2283 = vrot.slane %v1007, %v2282
        %v2284 = vadd.f32 %v2220, %v2255
        %v2285 = vadd.f32 %v2221, %v2259
        %v2286 = vadd.f32 %v2222, %v2263
        %v2287 = vadd.f32 %v2223, %v2267
        %v2288 = vadd.f32 %v2224, %v2271
        %v2289 = vadd.f32 %v2225, %v2275
        %v2290 = vadd.f32 %v2226, %v2279
        %v2291 = vadd.f32 %v2227, %v2283
        %v2292 = vadd.f32 %v2228, %v2255
        %v2293 = vadd.f32 %v2229, %v2259
        %v2294 = vadd.f32 %v2230, %v2263
        %v2295 = vadd.f32 %v2231, %v2267
        %v2296 = vadd.f32 %v2232, %v2271
        %v2297 = vadd.f32 %v2233, %v2275
        %v2298 = vadd.f32 %v2234, %v2279
        %v2299 = vadd.f32 %v2235, %v2283
        %v2300 = vadd.f32 %v2236, %v2255
        %v2301 = vadd.f32 %v2237, %v2259
        %v2302 = vadd.f32 %v2238, %v2263
        %v2303 = vadd.f32 %v2239, %v2267
        %v2304 = vadd.f32 %v2240, %v2271
        %v2305 = vadd.f32 %v2241, %v2275
        %v2306 = vadd.f32 %v2242, %v2279
        %v2307 = vadd.f32 %v2243, %v2283
        %v2308 = vadd.f32 %v2244, %v2255
        %v2309 = vadd.f32 %v2245, %v2259
        %v2310 = vadd.f32 %v2246, %v2263
        %v2311 = vadd.f32 %v2247, %v2267
        %v2312 = vadd.f32 %v2248, %v2271
        %v2313 = vadd.f32 %v2249, %v2275
        %v2314 = vadd.f32 %v2250, %v2279
        %v2315 = vadd.f32 %v2251, %v2283
        %v2316 = vld [vmem:[%s4] sm:$0xf]
        %2318 = vset.pattern.permute.xlu0 32
        %2319 = vperm.xlu0 %2318, %v2316
        %v2320 = vpop.permute.xlu0 %2319
        %v2322 = vsel %vm1302, %v2316, 0
        %2324 = vmatprep.subr.mxu0 %v2285
        %2325 = vmatpush1.msra.mxu0 %v2284
        %2326 = vmatprep.subr.mxu0 %v2293
        %2327 = vmatpush1.msra.mxu0 %v2292
        %2328 = vmatprep.subr.mxu0 %v2301
        %2329 = vmatpush1.msra.mxu0 %v2300
        %2330 = vmatprep.subr.mxu0 %v2309
        %2331 = vmatpush1.msra.mxu0 %v2308
        %2332 = vmatprep.subr.mxu0 0.0
        %2333 = vmatpush1.msra.mxu0 0.0
        %2334 = vmatprep.subr.mxu0 0.0
        %2335 = vmatpush1.msra.mxu0 0.0
        %2336 = vmatprep.subr.mxu0 0.0
        %2337 = vmatpush1.msra.mxu0 0.0
        %2338 = vmatprep.subr.mxu0 0.0
        %2339 = vmatpush1.msra.mxu0 0.0
        %2340 = vmatprep.subr.mxu0 0.0
        %2341 = vmatpush1.msra.mxu0 0.0
        %2342 = vmatprep.subr.mxu0 0.0
        %2343 = vmatpush1.msra.mxu0 0.0
        %2344 = vmatprep.subr.mxu0 0.0
        %2345 = vmatpush1.msra.mxu0 0.0
        %2346 = vmatprep.subr.mxu0 0.0
        %2347 = vmatpush1.msra.mxu0 0.0
        %2348 = vmatprep.subr.mxu0 0.0
        %2349 = vmatpush1.msra.mxu0 0.0
        %2350 = vmatprep.subr.mxu0 0.0
        %2351 = vmatpush1.msra.mxu0 0.0
        %2352 = vmatprep.subr.mxu0 0.0
        %2353 = vmatpush1.msra.mxu0 0.0
        %2354 = vmatprep.subr.mxu0 0.0
        %2355 = vmatpush1.msra.mxu0 0.0
        %2356 = vmatprep.subr.mxu0 0.0
        %2357 = vmatpush1.msra.mxu0 0.0
        %2358 = vmatprep.subr.mxu0 0.0
        %2359 = vmatpush1.msra.mxu0 0.0
        %2360 = vmatprep.subr.mxu0 0.0
        %2361 = vmatpush1.msra.mxu0 0.0
        %2362 = vmatprep.subr.mxu0 0.0
        %2363 = vmatpush1.msra.mxu0 0.0
        %2364 = vmatprep.subr.mxu0 0.0
        %2365 = vmatpush1.msra.mxu0 0.0
        %2366 = vmatprep.subr.mxu0 0.0
        %2367 = vmatpush1.msra.mxu0 0.0
        %2368 = vmatprep.subr.mxu0 0.0
        %2369 = vmatpush1.msra.mxu0 0.0
        %2370 = vmatprep.subr.mxu0 0.0
        %2371 = vmatpush1.msra.mxu0 0.0
        %2372 = vmatprep.subr.mxu0 0.0
        %2373 = vmatpush1.msra.mxu0 0.0
        %2374 = vmatprep.subr.mxu0 0.0
        %2375 = vmatpush1.msra.mxu0 0.0
        %2376 = vmatprep.subr.mxu0 0.0
        %2377 = vmatpush1.msra.mxu0 0.0
        %2378 = vmatprep.subr.mxu0 0.0
        %2379 = vmatpush1.msra.mxu0 0.0
        %2380 = vmatprep.subr.mxu0 0.0
        %2381 = vmatpush1.msra.mxu0 0.0
        %2382 = vmatprep.subr.mxu0 0.0
        %2383 = vmatpush1.msra.mxu0 0.0
        %2384 = vmatprep.subr.mxu0 0.0
        %2385 = vmatpush1.msra.mxu0 0.0
        %2386 = vmatprep.subr.mxu0 0.0
        %2387 = vmatpush1.msra.mxu0 0.0
        %2388 = vmatprep.mubr.f32.mxu0 0.0
        %2389 = vmatmul.mubr.f32.gmra.mrb[0].mxu0 %v2322
        %v2390 = vpop.f32.mrb[0].mxu0
        %v2391 = vadd.f32 %v2320, %v2390
        %v2392 = vpop.f32.mrb[0].mxu0
        %v2393 = vadd.f32 %v2320, %v2392
        %2394 = vdwg.mxu0
        %2395 = vmatprep.subr.mxu0 %v2287
        %2396 = vmatpush1.msra.mxu0 %v2286
        %2397 = vmatprep.subr.mxu0 %v2295
        %2398 = vmatpush1.msra.mxu0 %v2294
        %2399 = vmatprep.subr.mxu0 %v2303
        %2400 = vmatpush1.msra.mxu0 %v2302
        %2401 = vmatprep.subr.mxu0 %v2311
        %2402 = vmatpush1.msra.mxu0 %v2310
        %2403 = vmatprep.subr.mxu0 0.0
        %2404 = vmatpush1.msra.mxu0 0.0
        %2405 = vmatprep.subr.mxu0 0.0
        %2406 = vmatpush1.msra.mxu0 0.0
        %2407 = vmatprep.subr.mxu0 0.0
        %2408 = vmatpush1.msra.mxu0 0.0
        %2409 = vmatprep.subr.mxu0 0.0
        %2410 = vmatpush1.msra.mxu0 0.0
        %2411 = vmatprep.subr.mxu0 0.0
        %2412 = vmatpush1.msra.mxu0 0.0
        %2413 = vmatprep.subr.mxu0 0.0
        %2414 = vmatpush1.msra.mxu0 0.0
        %2415 = vmatprep.subr.mxu0 0.0
        %2416 = vmatpush1.msra.mxu0 0.0
        %2417 = vmatprep.subr.mxu0 0.0
        %2418 = vmatpush1.msra.mxu0 0.0
        %2419 = vmatprep.subr.mxu0 0.0
        %2420 = vmatpush1.msra.mxu0 0.0
        %2421 = vmatprep.subr.mxu0 0.0
        %2422 = vmatpush1.msra.mxu0 0.0
        %2423 = vmatprep.subr.mxu0 0.0
        %2424 = vmatpush1.msra.mxu0 0.0
        %2425 = vmatprep.subr.mxu0 0.0
        %2426 = vmatpush1.msra.mxu0 0.0
        %2427 = vmatprep.subr.mxu0 0.0
        %2428 = vmatpush1.msra.mxu0 0.0
        %2429 = vmatprep.subr.mxu0 0.0
        %2430 = vmatpush1.msra.mxu0 0.0
        %2431 = vmatprep.subr.mxu0 0.0
        %2432 = vmatpush1.msra.mxu0 0.0
        %2433 = vmatprep.subr.mxu0 0.0
        %2434 = vmatpush1.msra.mxu0 0.0
        %2435 = vmatprep.subr.mxu0 0.0
        %2436 = vmatpush1.msra.mxu0 0.0
        %2437 = vmatprep.subr.mxu0 0.0
        %2438 = vmatpush1.msra.mxu0 0.0
        %2439 = vmatprep.subr.mxu0 0.0
        %2440 = vmatpush1.msra.mxu0 0.0
        %2441 = vmatprep.subr.mxu0 0.0
        %2442 = vmatpush1.msra.mxu0 0.0
        %2443 = vmatprep.subr.mxu0 0.0
        %2444 = vmatpush1.msra.mxu0 0.0
        %2445 = vmatprep.subr.mxu0 0.0
        %2446 = vmatpush1.msra.mxu0 0.0
        %2447 = vmatprep.subr.mxu0 0.0
        %2448 = vmatpush1.msra.mxu0 0.0
        %2449 = vmatprep.subr.mxu0 0.0
        %2450 = vmatpush1.msra.mxu0 0.0
        %2451 = vmatprep.subr.mxu0 0.0
        %2452 = vmatpush1.msra.mxu0 0.0
        %2453 = vmatprep.subr.mxu0 0.0
        %2454 = vmatpush1.msra.mxu0 0.0
        %2455 = vmatprep.subr.mxu0 0.0
        %2456 = vmatpush1.msra.mxu0 0.0
        %2457 = vmatprep.subr.mxu0 0.0
        %2458 = vmatpush1.msra.mxu0 0.0
        %2459 = vmatprep.mubr.f32.mxu0 0.0
        %2460 = vmatmul.mubr.f32.gmra.mrb[0].mxu0 %v2322
        %v2461 = vpop.f32.mrb[0].mxu0
        %v2462 = vadd.f32 %v2320, %v2461
        %v2463 = vpop.f32.mrb[0].mxu0
        %v2464 = vadd.f32 %v2320, %v2463
        %2465 = vdwg.mxu0
        %2466 = vmatprep.subr.mxu0 %v2289
        %2467 = vmatpush1.msra.mxu0 %v2288
        %2468 = vmatprep.subr.mxu0 %v2297
        %2469 = vmatpush1.msra.mxu0 %v2296
        %2470 = vmatprep.subr.mxu0 %v2305
        %2471 = vmatpush1.msra.mxu0 %v2304
        %2472 = vmatprep.subr.mxu0 %v2313
        %2473 = vmatpush1.msra.mxu0 %v2312
        %2474 = vmatprep.subr.mxu0 0.0
        %2475 = vmatpush1.msra.mxu0 0.0
        %2476 = vmatprep.subr.mxu0 0.0
        %2477 = vmatpush1.msra.mxu0 0.0
        %2478 = vmatprep.subr.mxu0 0.0
        %2479 = vmatpush1.msra.mxu0 0.0
        %2480 = vmatprep.subr.mxu0 0.0
        %2481 = vmatpush1.msra.mxu0 0.0
        %2482 = vmatprep.subr.mxu0 0.0
        %2483 = vmatpush1.msra.mxu0 0.0
        %2484 = vmatprep.subr.mxu0 0.0
        %2485 = vmatpush1.msra.mxu0 0.0
        %2486 = vmatprep.subr.mxu0 0.0
        %2487 = vmatpush1.msra.mxu0 0.0
        %2488 = vmatprep.subr.mxu0 0.0
        %2489 = vmatpush1.msra.mxu0 0.0
        %2490 = vmatprep.subr.mxu0 0.0
        %2491 = vmatpush1.msra.mxu0 0.0
        %2492 = vmatprep.subr.mxu0 0.0
        %2493 = vmatpush1.msra.mxu0 0.0
        %2494 = vmatprep.subr.mxu0 0.0
        %2495 = vmatpush1.msra.mxu0 0.0
        %2496 = vmatprep.subr.mxu0 0.0
        %2497 = vmatpush1.msra.mxu0 0.0
        %2498 = vmatprep.subr.mxu0 0.0
        %2499 = vmatpush1.msra.mxu0 0.0
        %2500 = vmatprep.subr.mxu0 0.0
        %2501 = vmatpush1.msra.mxu0 0.0
        %2502 = vmatprep.subr.mxu0 0.0
        %2503 = vmatpush1.msra.mxu0 0.0
        %2504 = vmatprep.subr.mxu0 0.0
        %2505 = vmatpush1.msra.mxu0 0.0
        %2506 = vmatprep.subr.mxu0 0.0
        %2507 = vmatpush1.msra.mxu0 0.0
        %2508 = vmatprep.subr.mxu0 0.0
        %2509 = vmatpush1.msra.mxu0 0.0
        %2510 = vmatprep.subr.mxu0 0.0
        %2511 = vmatpush1.msra.mxu0 0.0
        %2512 = vmatprep.subr.mxu0 0.0
        %2513 = vmatpush1.msra.mxu0 0.0
        %2514 = vmatprep.subr.mxu0 0.0
        %2515 = vmatpush1.msra.mxu0 0.0
        %2516 = vmatprep.subr.mxu0 0.0
        %2517 = vmatpush1.msra.mxu0 0.0
        %2518 = vmatprep.subr.mxu0 0.0
        %2519 = vmatpush1.msra.mxu0 0.0
        %2520 = vmatprep.subr.mxu0 0.0
        %2521 = vmatpush1.msra.mxu0 0.0
        %2522 = vmatprep.subr.mxu0 0.0
        %2523 = vmatpush1.msra.mxu0 0.0
        %2524 = vmatprep.subr.mxu0 0.0
        %2525 = vmatpush1.msra.mxu0 0.0
        %2526 = vmatprep.subr.mxu0 0.0
        %2527 = vmatpush1.msra.mxu0 0.0
        %2528 = vmatprep.subr.mxu0 0.0
        %2529 = vmatpush1.msra.mxu0 0.0
        %2530 = vmatprep.mubr.f32.mxu0 0.0
        %2531 = vmatmul.mubr.f32.gmra.mrb[0].mxu0 %v2322
        %v2532 = vpop.f32.mrb[0].mxu0
        %v2533 = vadd.f32 %v2320, %v2532
        %v2534 = vpop.f32.mrb[0].mxu0
        %v2535 = vadd.f32 %v2320, %v2534
        %2536 = vdwg.mxu0
        %2537 = vmatprep.subr.mxu0 %v2291
        %2538 = vmatpush1.msra.mxu0 %v2290
        %2539 = vmatprep.subr.mxu0 %v2299
        %2540 = vmatpush1.msra.mxu0 %v2298
        %2541 = vmatprep.subr.mxu0 %v2307
        %2542 = vmatpush1.msra.mxu0 %v2306
        %2543 = vmatprep.subr.mxu0 %v2315
        %2544 = vmatpush1.msra.mxu0 %v2314
        %2545 = vmatprep.subr.mxu0 0.0
        %2546 = vmatpush1.msra.mxu0 0.0
        %2547 = vmatprep.subr.mxu0 0.0
        %2548 = vmatpush1.msra.mxu0 0.0
        %2549 = vmatprep.subr.mxu0 0.0
        %2550 = vmatpush1.msra.mxu0 0.0
        %2551 = vmatprep.subr.mxu0 0.0
        %2552 = vmatpush1.msra.mxu0 0.0
        %2553 = vmatprep.subr.mxu0 0.0
        %2554 = vmatpush1.msra.mxu0 0.0
        %2555 = vmatprep.subr.mxu0 0.0
        %2556 = vmatpush1.msra.mxu0 0.0
        %2557 = vmatprep.subr.mxu0 0.0
        %2558 = vmatpush1.msra.mxu0 0.0
        %2559 = vmatprep.subr.mxu0 0.0
        %2560 = vmatpush1.msra.mxu0 0.0
        %2561 = vmatprep.subr.mxu0 0.0
        %2562 = vmatpush1.msra.mxu0 0.0
        %2563 = vmatprep.subr.mxu0 0.0
        %2564 = vmatpush1.msra.mxu0 0.0
        %2565 = vmatprep.subr.mxu0 0.0
        %2566 = vmatpush1.msra.mxu0 0.0
        %2567 = vmatprep.subr.mxu0 0.0
        %2568 = vmatpush1.msra.mxu0 0.0
        %2569 = vmatprep.subr.mxu0 0.0
        %2570 = vmatpush1.msra.mxu0 0.0
        %2571 = vmatprep.subr.mxu0 0.0
        %2572 = vmatpush1.msra.mxu0 0.0
        %2573 = vmatprep.subr.mxu0 0.0
        %2574 = vmatpush1.msra.mxu0 0.0
        %2575 = vmatprep.subr.mxu0 0.0
        %2576 = vmatpush1.msra.mxu0 0.0
        %2577 = vmatprep.subr.mxu0 0.0
        %2578 = vmatpush1.msra.mxu0 0.0
        %2579 = vmatprep.subr.mxu0 0.0
        %2580 = vmatpush1.msra.mxu0 0.0
        %2581 = vmatprep.subr.mxu0 0.0
        %2582 = vmatpush1.msra.mxu0 0.0
        %2583 = vmatprep.subr.mxu0 0.0
        %2584 = vmatpush1.msra.mxu0 0.0
        %2585 = vmatprep.subr.mxu0 0.0
        %2586 = vmatpush1.msra.mxu0 0.0
        %2587 = vmatprep.subr.mxu0 0.0
        %2588 = vmatpush1.msra.mxu0 0.0
        %2589 = vmatprep.subr.mxu0 0.0
        %2590 = vmatpush1.msra.mxu0 0.0
        %2591 = vmatprep.subr.mxu0 0.0
        %2592 = vmatpush1.msra.mxu0 0.0
        %2593 = vmatprep.subr.mxu0 0.0
        %2594 = vmatpush1.msra.mxu0 0.0
        %2595 = vmatprep.subr.mxu0 0.0
        %2596 = vmatpush1.msra.mxu0 0.0
        %2597 = vmatprep.subr.mxu0 0.0
        %2598 = vmatpush1.msra.mxu0 0.0
        %2599 = vmatprep.subr.mxu0 0.0
        %2600 = vmatpush1.msra.mxu0 0.0
        %2601 = vmatprep.mubr.f32.mxu0 0.0
        %2602 = vmatmul.mubr.f32.gmra.mrb[0].mxu0 %v2322
        %v2603 = vpop.f32.mrb[0].mxu0
        %v2604 = vadd.f32 %v2320, %v2603
        %v2605 = vpop.f32.mrb[0].mxu0
        %v2606 = vadd.f32 %v2320, %v2605
        %2607 = vdwg.mxu0
        %v2616 = vcombine.low %v2391, %v2393
        %v2617 = vcombine.low %v2462, %v2464
        %v2618 = vcombine.low %v2533, %v2535
        %v2619 = vcombine.low %v2604, %v2606
        %2624 = vst [vmem:[%s231] sm:$0xff] %v2616
        %2625 = vst [vmem:[%s231 + $0x8] sm:$0xff] %v2617
        %2626 = vst [vmem:[%s231 + $0x10] sm:$0xff] %v2618
        %2627 = vst [vmem:[%s231 + $0x18] sm:$0xff] %v2619
        %s2628 = sand.u32 %s138, 1
        %s2629 = scalar_lea.sflag [#allocation4], %s2628
        %s2630 = sand.u32 %s138, 1
        %s2631 = smul.addr %s2630, 32
        %s2632 = scalar_lea.vmem [#allocation5], %s2631
        // Predicated region
        $region45: #{tpu_custom_call.1} parent=39 // pred_check
          %p2633 = pneg %p148
        $region46: #{tpu_custom_call.1} parent=39 // pred_check_branch
          %2635 = sbr.rel (%p2633) target = $region48
        $region47: #{tpu_custom_call.1} parent=39 // pred_region
          %s2636 = smul.u32 8, %s20
          %s2638 = ssub.s32 512, 512
          %2639 = vsyncadd %s2629, %s2638
          %s2640 = smul.addr %s2636, 64
          %s2641 = scalar_lea.hbm %s5, %s2640
          %s2643 = sshll.u32 %s2632, 4
          %s2644 = int_to_ptr.vmem [resolvable:$true] %s2643
          %2646 = dma.vmem_to_hbm [thread:$0]  %s2644, 512, %s2641, %s2629
        $region48: #{tpu_custom_call.1} parent=39 // pred_fallthru
          _
      $region40: #{tpu_custom_call.1} parent=5 // pred_fallthru
        _
      %p2647 = scmp.le.s32.totalorder 2, %s15
      // Predicated region
      $region49: #{tpu_custom_call.1} parent=5 // pred_check
        %p2648 = pneg %p2647
      $region50: #{tpu_custom_call.1} parent=5 // pred_check_branch
        %2650 = sbr.rel (%p2648) target = $region52
      $region51: #{tpu_custom_call.1} parent=5 // pred_region
        %s2651 = ssub.s32 %s15, 2
        // Predicated region
        $region53: #{tpu_custom_call.1} parent=51 // pred_check
          %p2652 = pneg %p154
        $region54: #{tpu_custom_call.1} parent=51 // pred_check_branch
          %2654 = sbr.rel (%p2652) target = $region56
        $region55: #{tpu_custom_call.1} parent=51 // pred_region
          %s2655 = sand.u32 %s139, 1
          %s2656 = scalar_lea.sflag [#allocation4], %s2655
          %s2657 = sand.u32 %s139, 1
          %s2658 = smul.addr %s2657, 32
          %s2659 = scalar_lea.vmem [#allocation5], %s2658
          %2660 = dma.done %s2656, 512
        $region56: #{tpu_custom_call.1} parent=51 // pred_fallthru
          _
      $region52: #{tpu_custom_call.1} parent=5 // pred_fallthru
        _
    $region6: #{tpu_custom_call.1} parent=1 // loop_footer
      %s19 = sadd.s32 1, %s15
    $region7: #{tpu_custom_call.1} parent=1 // loop_footer_branch
      %14 = sbr.rel target = $region3
    $region8: #{tpu_custom_call.1} parent=1 // loop_exit
      _
    %2661 = vsyncpa [#allocation3], 1
    %s2662 = scalar_lea.sflag [#allocation3], 1
    %2663 = vsyncpa %s2662, 1
    %2664 = vsyncpa [#allocation4], 1
    %s2665 = scalar_lea.sflag [#allocation4], 1
    %2666 = vsyncpa %s2665, 1

</llo_original>
